<compile_context>
chip_gen: v5e
topology: v5e:2x2
jax: 0.10.0
libtpu: 0.0.40
codegen_flags: <defaults>
</compile_context>

<pallas_src>
import functools
import math

import jax
import jax.numpy as jnp
from jax.experimental import pallas as pl
from jax.experimental.pallas import tpu as pltpu

# ---- synthetic "pretrained BERT" config (small) ----
VOCAB = 128           # == one vreg lane width -> in-kernel one-hot gather is lane-dense
HIDDEN = 32
NUM_HEADS = 2
HEAD_DIM = HIDDEN // NUM_HEADS
NUM_LAYERS = 2
INTERMEDIATE = 64
MAX_POS = 64
TYPE_VOCAB = 2
LN_EPS = 1e-12        # BERT layernorm eps


# ---------------- in-kernel helpers (f32 elementwise math; v5e has no bf16 VPU/EUP) ----

def _layernorm(x, gamma, beta):
    mean = jnp.mean(x, axis=-1, keepdims=True)
    var = jnp.mean(jnp.square(x - mean), axis=-1, keepdims=True)
    return (x - mean) * jax.lax.rsqrt(var + LN_EPS) * gamma + beta


def _gelu(x):
    # TODO(synk): tanh-approx GELU; HF BERT default is erf-GELU (difference ~1e-3).
    c = math.sqrt(2.0 / math.pi)
    return 0.5 * x * (1.0 + jnp.tanh(c * (x + 0.044715 * x * x * x)))


# ---------------- the single fused kernel ----------------

def _bert_fused_kernel(tok_ref, we_ref, pt_ref, eg_ref, eb_ref,
                       wqkv_ref, bqkv_ref, wo_ref, bo_ref, ln1g_ref, ln1b_ref,
                       w1_ref, b1_ref, w2_ref, b2_ref, ln2g_ref, ln2b_ref,
                       o_ref, *, batch, seq):
    m_rows = batch * seq  # M = B*S rows, hidden on the lane axis

    # ---- embeddings: one-hot token gather on the MXU + pos/type add + LayerNorm ----
    vocab_ids = jax.lax.broadcasted_iota(jnp.int32, (m_rows, VOCAB), 1)
    onehot = (tok_ref[...] == vocab_ids).astype(jnp.bfloat16)                    # [M, V]
    word = jnp.dot(onehot, we_ref[...], preferred_element_type=jnp.float32)      # [M, H]
    x = _layernorm(word + pt_ref[...], eg_ref[...], eb_ref[...])
    # TODO(synk): no attention_mask for padding tokens (original call is embedding(tokens)).

    dn_mn = (((1,), (1,)), ((), ()))  # contract last dims: 'md,nd->mn' (no kh.T needed)

    for l in range(NUM_LAYERS):  # unrolled at trace time (NUM_LAYERS is small & static)
        # ---- self-attention (fused QKV; 1/sqrt(head_dim) pre-folded into Q weights) ----
        qkv = jnp.dot(x.astype(jnp.bfloat16), wqkv_ref[l],
                      preferred_element_type=jnp.float32) + bqkv_ref[l]          # [M, 3H]

        attn_rows = []
        for b in range(batch):           # per-batch [S,S] attention: O(B*S^2), no mask
            r0 = b * seq
            out_b = None
            for h in range(NUM_HEADS):
                c0 = h * HEAD_DIM
                qh = qkv[r0:r0 + seq, c0:c0 + HEAD_DIM].astype(jnp.bfloat16)
                kh = qkv[r0:r0 + seq,
                         HIDDEN + c0:HIDDEN + c0 + HEAD_DIM].astype(jnp.bfloat16)
                vh = qkv[r0:r0 + seq,
                         2 * HIDDEN + c0:2 * HIDDEN + c0 + HEAD_DIM].astype(jnp.bfloat16)

                s = jax.lax.dot_general(qh, kh, dn_mn,
                                        preferred_element_type=jnp.float32)      # [S, S]
                s_max = jnp.max(s, axis=-1, keepdims=True)
                p = jnp.exp(s - s_max)
                p = p * pl.reciprocal(jnp.sum(p, axis=-1, keepdims=True), approx=True)

                ctx = jnp.dot(p.astype(jnp.bfloat16), vh,
                              preferred_element_type=jnp.float32)                # [S, DH]
                # per-head output projection: fold the ctx concat into MXU accumulation
                wo_h = wo_ref[l, c0:c0 + HEAD_DIM, :]                            # [DH, H]
                head_out = jnp.dot(ctx.astype(jnp.bfloat16), wo_h,
                                   preferred_element_type=jnp.float32)           # [S, H]
                out_b = head_out if out_b is None else out_b + head_out
            attn_rows.append(out_b)

        attn_out = jnp.concatenate(attn_rows, axis=0) + bo_ref[l]                # [M, H]
        x = _layernorm(attn_out + x, ln1g_ref[l], ln1b_ref[l])

        # ---- feed-forward block ----
        inter = _gelu(jnp.dot(x.astype(jnp.bfloat16), w1_ref[l],
                              preferred_element_type=jnp.float32) + b1_ref[l])
        ffn = jnp.dot(inter.astype(jnp.bfloat16), w2_ref[l],
                      preferred_element_type=jnp.float32) + b2_ref[l]
        x = _layernorm(ffn + x, ln2g_ref[l], ln2b_ref[l])

    o_ref[...] = x


# ---------------- pallas_call glue ----------------

def _full_spec(shape):
    nd = len(shape)
    return pl.BlockSpec(tuple(shape), lambda i, _nd=nd: (0,) * _nd)


def bert_embedding_layer_forward(tokens, params):
    B, S = tokens.shape
    M = B * S
    # tiny JAX-side prep on constants only: per-row (pos + type) embedding, tiled over batch.
    pos_type = jnp.tile(params["pos_emb"][:S] + params["type_emb"][0][None, :], (B, 1))
    tok = tokens.reshape(M, 1).astype(jnp.int32)

    inputs = [tok, params["word_emb"], pos_type,
              params["emb_gamma"], params["emb_beta"],
              params["wqkv"], params["bqkv"], params["wo"], params["bo"],
              params["ln1_g"], params["ln1_b"],
              params["w1"], params["b1"], params["w2"], params["b2"],
              params["ln2_g"], params["ln2_b"]]

    out = pl.pallas_call(
        functools.partial(_bert_fused_kernel, batch=B, seq=S),
        out_shape=jax.ShapeDtypeStruct((M, HIDDEN), jnp.float32),
        # Whole model in one grid step: at this size every weight + activation fits in a
        # few hundred KiB of VMEM, so fusion (not tiling) is the win.  At real BERT sizes
        # this becomes an M-tiled "parallel" axis (v7x: 2 TCs) x layer-streaming axis.
        grid=(1,),
        in_specs=[_full_spec(a.shape) for a in inputs],
        out_specs=_full_spec((M, HIDDEN)),
        compiler_params=pltpu.CompilerParams(dimension_semantics=("arbitrary",)),
    )(*inputs)
    return out.reshape(B, S, HIDDEN)  # last_hidden_states, i.e. outputs[0] of BertModel


# ---------------- deterministic synthetic "pretrained" weights ----------------

def init_params(key):
    def normal(k, shape, scale=0.02):
        return (scale * jax.random.normal(k, shape)).astype(jnp.float32)

    keys = jax.random.split(key, 4 + NUM_LAYERS)
    params = {
        "word_emb": normal(keys[0], (VOCAB, HIDDEN)),
        "pos_emb": normal(keys[1], (MAX_POS, HIDDEN)),
        "type_emb": normal(keys[2], (TYPE_VOCAB, HIDDEN)),
        "emb_gamma": jnp.ones((HIDDEN,), jnp.float32),
        "emb_beta": jnp.zeros((HIDDEN,), jnp.float32),
        "layers": [],
    }
    for l in range(NUM_LAYERS):
        lk = jax.random.split(keys[4 + l], 6)
        params["layers"].append({
            "wq": normal(lk[0], (HIDDEN, HIDDEN)), "bq": jnp.zeros((HIDDEN,), jnp.float32),
            "wk": normal(lk[1], (HIDDEN, HIDDEN)), "bk": jnp.zeros((HIDDEN,), jnp.float32),
            "wv": normal(lk[2], (HIDDEN, HIDDEN)), "bv": jnp.zeros((HIDDEN,), jnp.float32),
            "wo": normal(lk[3], (HIDDEN, HIDDEN)), "bo": jnp.zeros((HIDDEN,), jnp.float32),
            "ln1_g": jnp.ones((HIDDEN,), jnp.float32), "ln1_b": jnp.zeros((HIDDEN,), jnp.float32),
            "w1": normal(lk[4], (HIDDEN, INTERMEDIATE)), "b1": jnp.zeros((INTERMEDIATE,), jnp.float32),
            "w2": normal(lk[5], (INTERMEDIATE, HIDDEN)), "b2": jnp.zeros((HIDDEN,), jnp.float32),
            "ln2_g": jnp.ones((HIDDEN,), jnp.float32), "ln2_b": jnp.zeros((HIDDEN,), jnp.float32),
        })
    return params


def prepare_params(params):
    """Fold the attention scale into Q, fuse QKV, stack layers, cast matmul weights to bf16.

    wo stays [L, H, H]; the kernel row-slices it per head ([DH, H]) so the per-head
    context never needs a lane-concat before the output projection.
    """
    scale = 1.0 / math.sqrt(HEAD_DIM)
    acc = {k: [] for k in ("wqkv", "bqkv", "wo", "bo", "ln1_g", "ln1_b",
                           "w1", "b1", "w2", "b2", "ln2_g", "ln2_b")}
    for L in params["layers"]:
        acc["wqkv"].append(jnp.concatenate([L["wq"] * scale, L["wk"], L["wv"]], axis=1))
        acc["bqkv"].append(jnp.concatenate([L["bq"] * scale, L["bk"], L["bv"]])[None, :])
        acc["wo"].append(L["wo"]);           acc["bo"].append(L["bo"][None, :])
        acc["ln1_g"].append(L["ln1_g"][None, :]); acc["ln1_b"].append(L["ln1_b"][None, :])
        acc["w1"].append(L["w1"]);           acc["b1"].append(L["b1"][None, :])
        acc["w2"].append(L["w2"]);           acc["b2"].append(L["b2"][None, :])
        acc["ln2_g"].append(L["ln2_g"][None, :]); acc["ln2_b"].append(L["ln2_b"][None, :])

    def st(xs, dt=jnp.float32):
        return jnp.stack(xs).astype(dt)

    return {
        "word_emb": params["word_emb"].astype(jnp.bfloat16),
        "pos_emb": params["pos_emb"],
        "type_emb": params["type_emb"],
        "emb_gamma": params["emb_gamma"][None, :],
        "emb_beta": params["emb_beta"][None, :],
        "wqkv": st(acc["wqkv"], jnp.bfloat16), "bqkv": st(acc["bqkv"]),
        "wo": st(acc["wo"], jnp.bfloat16),     "bo": st(acc["bo"]),
        "ln1_g": st(acc["ln1_g"]),             "ln1_b": st(acc["ln1_b"]),
        "w1": st(acc["w1"], jnp.bfloat16),     "b1": st(acc["b1"]),
        "w2": st(acc["w2"], jnp.bfloat16),     "b2": st(acc["b2"]),
        "ln2_g": st(acc["ln2_g"]),             "ln2_b": st(acc["ln2_b"]),
    }


if __name__ == "__main__":
    B, S = 2, 8
    key = jax.random.PRNGKey(0)
    tok_key, param_key = jax.random.split(key)
    tokens = jax.random.randint(tok_key, (B, S), 0, VOCAB, dtype=jnp.int32)
    params = prepare_params(init_params(param_key))

    fwd = jax.jit(bert_embedding_layer_forward)
    out = fwd(tokens, params)
    jax.block_until_ready(out)

    assert out.shape == (B, S, HIDDEN), out.shape
    assert out.dtype == jnp.float32
    assert bool(jnp.all(jnp.isfinite(out)))
    print("KERNEL_OK")
</pallas_src>

<mosaic_0001>
module attributes {stable_mosaic.version = 11 : i64} {
  func.func @_bert_fused_kernel(%arg0: i32, %arg1: memref<16x1xi32, #tpu.memory_space<vmem>>, %arg2: memref<128x32xbf16, #tpu.memory_space<vmem>>, %arg3: memref<16x32xf32, #tpu.memory_space<vmem>>, %arg4: memref<1x32xf32, #tpu.memory_space<vmem>>, %arg5: memref<1x32xf32, #tpu.memory_space<vmem>>, %arg6: memref<2x32x96xbf16, #tpu.memory_space<vmem>>, %arg7: memref<2x1x96xf32, #tpu.memory_space<vmem>>, %arg8: memref<2x32x32xbf16, #tpu.memory_space<vmem>>, %arg9: memref<2x1x32xf32, #tpu.memory_space<vmem>>, %arg10: memref<2x1x32xf32, #tpu.memory_space<vmem>>, %arg11: memref<2x1x32xf32, #tpu.memory_space<vmem>>, %arg12: memref<2x32x64xbf16, #tpu.memory_space<vmem>>, %arg13: memref<2x1x64xf32, #tpu.memory_space<vmem>>, %arg14: memref<2x64x32xbf16, #tpu.memory_space<vmem>>, %arg15: memref<2x1x32xf32, #tpu.memory_space<vmem>>, %arg16: memref<2x1x32xf32, #tpu.memory_space<vmem>>, %arg17: memref<2x1x32xf32, #tpu.memory_space<vmem>>, %arg18: memref<16x32xf32, #tpu.memory_space<vmem>>) attributes {dimension_semantics = [#tpu.dimension_semantics<arbitrary>], iteration_bounds = array<i64: 1>, scalar_prefetch = 0 : i64, scratch_operands = 0 : i64, tpu.core_type = #tpu.core_type<tc>, window_params = [{pipeline_mode = #tpu.pipeline_mode<synchronous>, transform_indices = @transform_0, window_bounds = array<i64: 16, 1>}, {pipeline_mode = #tpu.pipeline_mode<synchronous>, transform_indices = @transform_1, window_bounds = array<i64: 128, 32>}, {pipeline_mode = #tpu.pipeline_mode<synchronous>, transform_indices = @transform_2, window_bounds = array<i64: 16, 32>}, {pipeline_mode = #tpu.pipeline_mode<synchronous>, transform_indices = @transform_3, window_bounds = array<i64: 1, 32>}, {pipeline_mode = #tpu.pipeline_mode<synchronous>, transform_indices = @transform_4, window_bounds = array<i64: 1, 32>}, {pipeline_mode = #tpu.pipeline_mode<synchronous>, transform_indices = @transform_5, window_bounds = array<i64: 2, 32, 96>}, {pipeline_mode = #tpu.pipeline_mode<synchronous>, transform_indices = @transform_6, window_bounds = array<i64: 2, 1, 96>}, {pipeline_mode = #tpu.pipeline_mode<synchronous>, transform_indices = @transform_7, window_bounds = array<i64: 2, 32, 32>}, {pipeline_mode = #tpu.pipeline_mode<synchronous>, transform_indices = @transform_8, window_bounds = array<i64: 2, 1, 32>}, {pipeline_mode = #tpu.pipeline_mode<synchronous>, transform_indices = @transform_9, window_bounds = array<i64: 2, 1, 32>}, {pipeline_mode = #tpu.pipeline_mode<synchronous>, transform_indices = @transform_10, window_bounds = array<i64: 2, 1, 32>}, {pipeline_mode = #tpu.pipeline_mode<synchronous>, transform_indices = @transform_11, window_bounds = array<i64: 2, 32, 64>}, {pipeline_mode = #tpu.pipeline_mode<synchronous>, transform_indices = @transform_12, window_bounds = array<i64: 2, 1, 64>}, {pipeline_mode = #tpu.pipeline_mode<synchronous>, transform_indices = @transform_13, window_bounds = array<i64: 2, 64, 32>}, {pipeline_mode = #tpu.pipeline_mode<synchronous>, transform_indices = @transform_14, window_bounds = array<i64: 2, 1, 32>}, {pipeline_mode = #tpu.pipeline_mode<synchronous>, transform_indices = @transform_15, window_bounds = array<i64: 2, 1, 32>}, {pipeline_mode = #tpu.pipeline_mode<synchronous>, transform_indices = @transform_16, window_bounds = array<i64: 2, 1, 32>}, {pipeline_mode = #tpu.pipeline_mode<synchronous>, transform_indices = @transform_17, window_bounds = array<i64: 16, 32>}]} {
    %0 = tpu.iota {dimensions = array<i32: 1>} : vector<16x128xi32>
    %c0 = arith.constant 0 : index
    %c0_0 = arith.constant 0 : index
    %1 = vector.load %arg1[%c0, %c0_0] : memref<16x1xi32, #tpu.memory_space<vmem>>, vector<16x1xi32>
    %2 = vector.broadcast %1 : vector<16x1xi32> to vector<16x128xi32>
    %3 = arith.cmpi eq, %2, %0 : vector<16x128xi32>
    %4 = arith.extui %3 : vector<16x128xi1> to vector<16x128xi32>
    %5 = arith.sitofp %4 : vector<16x128xi32> to vector<16x128xf32>
    %6 = arith.truncf %5 : vector<16x128xf32> to vector<16x128xbf16>
    %c0_1 = arith.constant 0 : index
    %c0_2 = arith.constant 0 : index
    %7 = vector.load %arg2[%c0_1, %c0_2] : memref<128x32xbf16, #tpu.memory_space<vmem>>, vector<128x32xbf16>
    %cst = arith.constant dense<0.000000e+00> : vector<16x32xf32>
    %8 = tpu.matmul %6, %7, %cst {dimension_numbers = #tpu.dot_dimension_numbers<[1], [0], [0], [1], [0, 0, 1, 1], [], []>} : vector<16x128xbf16>, vector<128x32xbf16>, vector<16x32xf32> -> vector<16x32xf32>
    %c0_3 = arith.constant 0 : index
    %c0_4 = arith.constant 0 : index
    %9 = vector.load %arg3[%c0_3, %c0_4] : memref<16x32xf32, #tpu.memory_space<vmem>>, vector<16x32xf32>
    %10 = arith.addf %8, %9 : vector<16x32xf32>
    %c0_5 = arith.constant 0 : index
    %c0_6 = arith.constant 0 : index
    %11 = vector.load %arg4[%c0_5, %c0_6] : memref<1x32xf32, #tpu.memory_space<vmem>>, vector<1x32xf32>
    %c0_7 = arith.constant 0 : index
    %c0_8 = arith.constant 0 : index
    %12 = vector.load %arg5[%c0_7, %c0_8] : memref<1x32xf32, #tpu.memory_space<vmem>>, vector<1x32xf32>
    %cst_9 = arith.constant dense<0.000000e+00> : vector<16xf32>
    %13 = vector.multi_reduction <add>, %10, %cst_9 [1] : vector<16x32xf32> to vector<16xf32>
    %14 = vector.shape_cast %13 : vector<16xf32> to vector<16x1xf32>
    %cst_10 = arith.constant 3.200000e+01 : f32
    %15 = vector.broadcast %cst_10 : f32 to vector<16x1xf32>
    %16 = arith.divf %14, %15 : vector<16x1xf32>
    %17 = vector.broadcast %16 : vector<16x1xf32> to vector<16x32xf32>
    %18 = arith.subf %10, %17 : vector<16x32xf32>
    %19 = arith.mulf %18, %18 : vector<16x32xf32>
    %cst_11 = arith.constant dense<0.000000e+00> : vector<16xf32>
    %20 = vector.multi_reduction <add>, %19, %cst_11 [1] : vector<16x32xf32> to vector<16xf32>
    %21 = vector.shape_cast %20 : vector<16xf32> to vector<16x1xf32>
    %cst_12 = arith.constant 3.200000e+01 : f32
    %22 = vector.broadcast %cst_12 : f32 to vector<16x1xf32>
    %23 = arith.divf %21, %22 : vector<16x1xf32>
    %24 = vector.broadcast %16 : vector<16x1xf32> to vector<16x32xf32>
    %25 = arith.subf %10, %24 : vector<16x32xf32>
    %cst_13 = arith.constant 9.99999996E-13 : f32
    %26 = vector.broadcast %cst_13 : f32 to vector<16x1xf32>
    %27 = arith.addf %23, %26 : vector<16x1xf32>
    %28 = math.rsqrt %27 : vector<16x1xf32>
    %29 = vector.broadcast %28 : vector<16x1xf32> to vector<16x32xf32>
    %30 = arith.mulf %25, %29 : vector<16x32xf32>
    %31 = vector.broadcast %11 : vector<1x32xf32> to vector<16x32xf32>
    %32 = arith.mulf %30, %31 : vector<16x32xf32>
    %33 = vector.broadcast %12 : vector<1x32xf32> to vector<16x32xf32>
    %34 = arith.addf %32, %33 : vector<16x32xf32>
    %35 = arith.truncf %34 : vector<16x32xf32> to vector<16x32xbf16>
    %c0_14 = arith.constant 0 : index
    %c0_15 = arith.constant 0 : index
    %c0_16 = arith.constant 0 : index
    %36 = vector.load %arg6[%c0_14, %c0_15, %c0_16] : memref<2x32x96xbf16, #tpu.memory_space<vmem>>, vector<1x32x96xbf16>
    %37 = vector.shape_cast %36 : vector<1x32x96xbf16> to vector<32x96xbf16>
    %cst_17 = arith.constant dense<0.000000e+00> : vector<16x96xf32>
    %38 = tpu.matmul %35, %37, %cst_17 {dimension_numbers = #tpu.dot_dimension_numbers<[1], [0], [0], [1], [0, 0, 1, 1], [], []>} : vector<16x32xbf16>, vector<32x96xbf16>, vector<16x96xf32> -> vector<16x96xf32>
    %c0_18 = arith.constant 0 : index
    %c0_19 = arith.constant 0 : index
    %c0_20 = arith.constant 0 : index
    %39 = vector.load %arg7[%c0_18, %c0_19, %c0_20] : memref<2x1x96xf32, #tpu.memory_space<vmem>>, vector<1x1x96xf32>
    %40 = vector.shape_cast %39 : vector<1x1x96xf32> to vector<1x96xf32>
    %41 = vector.broadcast %40 : vector<1x96xf32> to vector<16x96xf32>
    %42 = arith.addf %38, %41 : vector<16x96xf32>
    %43 = vector.extract_strided_slice %42 {offsets = [0, 0], sizes = [8, 16], strides = [1, 1]} : vector<16x96xf32> to vector<8x16xf32>
    %44 = arith.truncf %43 : vector<8x16xf32> to vector<8x16xbf16>
    %45 = vector.extract_strided_slice %42 {offsets = [0, 32], sizes = [8, 16], strides = [1, 1]} : vector<16x96xf32> to vector<8x16xf32>
    %46 = arith.truncf %45 : vector<8x16xf32> to vector<8x16xbf16>
    %47 = vector.extract_strided_slice %42 {offsets = [0, 64], sizes = [8, 16], strides = [1, 1]} : vector<16x96xf32> to vector<8x16xf32>
    %48 = arith.truncf %47 : vector<8x16xf32> to vector<8x16xbf16>
    %cst_21 = arith.constant dense<0.000000e+00> : vector<8x8xf32>
    %49 = tpu.matmul %44, %46, %cst_21 {dimension_numbers = #tpu.dot_dimension_numbers<[1], [1], [0], [0], [0, 0, 1, 0], [], []>} : vector<8x16xbf16>, vector<8x16xbf16>, vector<8x8xf32> -> vector<8x8xf32>
    %cst_22 = arith.constant dense<0xFF800000> : vector<8xf32>
    %50 = vector.multi_reduction <maximumf>, %49, %cst_22 [1] : vector<8x8xf32> to vector<8xf32>
    %51 = vector.shape_cast %50 : vector<8xf32> to vector<8x1xf32>
    %52 = vector.broadcast %51 : vector<8x1xf32> to vector<8x8xf32>
    %53 = arith.subf %49, %52 : vector<8x8xf32>
    %54 = math.exp %53 : vector<8x8xf32>
    %cst_23 = arith.constant dense<0.000000e+00> : vector<8xf32>
    %55 = vector.multi_reduction <add>, %54, %cst_23 [1] : vector<8x8xf32> to vector<8xf32>
    %56 = vector.shape_cast %55 : vector<8xf32> to vector<8x1xf32>
    %57 = tpu.reciprocal %56 {approx = true} : vector<8x1xf32> -> vector<8x1xf32>
    %58 = vector.broadcast %57 : vector<8x1xf32> to vector<8x8xf32>
    %59 = arith.mulf %54, %58 : vector<8x8xf32>
    %60 = arith.truncf %59 : vector<8x8xf32> to vector<8x8xbf16>
    %cst_24 = arith.constant dense<0.000000e+00> : vector<8x16xf32>
    %61 = tpu.matmul %60, %48, %cst_24 {dimension_numbers = #tpu.dot_dimension_numbers<[1], [0], [0], [1], [0, 0, 1, 1], [], []>} : vector<8x8xbf16>, vector<8x16xbf16>, vector<8x16xf32> -> vector<8x16xf32>
    %c0_25 = arith.constant 0 : index
    %c0_26 = arith.constant 0 : index
    %c0_27 = arith.constant 0 : index
    %62 = vector.load %arg8[%c0_25, %c0_26, %c0_27] : memref<2x32x32xbf16, #tpu.memory_space<vmem>>, vector<1x16x32xbf16>
    %63 = vector.shape_cast %62 : vector<1x16x32xbf16> to vector<16x32xbf16>
    %64 = arith.truncf %61 : vector<8x16xf32> to vector<8x16xbf16>
    %cst_28 = arith.constant dense<0.000000e+00> : vector<8x32xf32>
    %65 = tpu.matmul %64, %63, %cst_28 {dimension_numbers = #tpu.dot_dimension_numbers<[1], [0], [0], [1], [0, 0, 1, 1], [], []>} : vector<8x16xbf16>, vector<16x32xbf16>, vector<8x32xf32> -> vector<8x32xf32>
    %66 = vector.extract_strided_slice %42 {offsets = [0, 16], sizes = [8, 16], strides = [1, 1]} : vector<16x96xf32> to vector<8x16xf32>
    %67 = arith.truncf %66 : vector<8x16xf32> to vector<8x16xbf16>
    %68 = vector.extract_strided_slice %42 {offsets = [0, 48], sizes = [8, 16], strides = [1, 1]} : vector<16x96xf32> to vector<8x16xf32>
    %69 = arith.truncf %68 : vector<8x16xf32> to vector<8x16xbf16>
    %70 = vector.extract_strided_slice %42 {offsets = [0, 80], sizes = [8, 16], strides = [1, 1]} : vector<16x96xf32> to vector<8x16xf32>
    %71 = arith.truncf %70 : vector<8x16xf32> to vector<8x16xbf16>
    %cst_29 = arith.constant dense<0.000000e+00> : vector<8x8xf32>
    %72 = tpu.matmul %67, %69, %cst_29 {dimension_numbers = #tpu.dot_dimension_numbers<[1], [1], [0], [0], [0, 0, 1, 0], [], []>} : vector<8x16xbf16>, vector<8x16xbf16>, vector<8x8xf32> -> vector<8x8xf32>
    %cst_30 = arith.constant dense<0xFF800000> : vector<8xf32>
    %73 = vector.multi_reduction <maximumf>, %72, %cst_30 [1] : vector<8x8xf32> to vector<8xf32>
    %74 = vector.shape_cast %73 : vector<8xf32> to vector<8x1xf32>
    %75 = vector.broadcast %74 : vector<8x1xf32> to vector<8x8xf32>
    %76 = arith.subf %72, %75 : vector<8x8xf32>
    %77 = math.exp %76 : vector<8x8xf32>
    %cst_31 = arith.constant dense<0.000000e+00> : vector<8xf32>
    %78 = vector.multi_reduction <add>, %77, %cst_31 [1] : vector<8x8xf32> to vector<8xf32>
    %79 = vector.shape_cast %78 : vector<8xf32> to vector<8x1xf32>
    %80 = tpu.reciprocal %79 {approx = true} : vector<8x1xf32> -> vector<8x1xf32>
    %81 = vector.broadcast %80 : vector<8x1xf32> to vector<8x8xf32>
    %82 = arith.mulf %77, %81 : vector<8x8xf32>
    %83 = arith.truncf %82 : vector<8x8xf32> to vector<8x8xbf16>
    %cst_32 = arith.constant dense<0.000000e+00> : vector<8x16xf32>
    %84 = tpu.matmul %83, %71, %cst_32 {dimension_numbers = #tpu.dot_dimension_numbers<[1], [0], [0], [1], [0, 0, 1, 1], [], []>} : vector<8x8xbf16>, vector<8x16xbf16>, vector<8x16xf32> -> vector<8x16xf32>
    %c0_33 = arith.constant 0 : index
    %c16 = arith.constant 16 : index
    %c0_34 = arith.constant 0 : index
    %85 = vector.load %arg8[%c0_33, %c16, %c0_34] : memref<2x32x32xbf16, #tpu.memory_space<vmem>>, vector<1x16x32xbf16>
    %86 = vector.shape_cast %85 : vector<1x16x32xbf16> to vector<16x32xbf16>
    %87 = arith.truncf %84 : vector<8x16xf32> to vector<8x16xbf16>
    %cst_35 = arith.constant dense<0.000000e+00> : vector<8x32xf32>
    %88 = tpu.matmul %87, %86, %cst_35 {dimension_numbers = #tpu.dot_dimension_numbers<[1], [0], [0], [1], [0, 0, 1, 1], [], []>} : vector<8x16xbf16>, vector<16x32xbf16>, vector<8x32xf32> -> vector<8x32xf32>
    %89 = arith.addf %65, %88 : vector<8x32xf32>
    %90 = vector.extract_strided_slice %42 {offsets = [8, 0], sizes = [8, 16], strides = [1, 1]} : vector<16x96xf32> to vector<8x16xf32>
    %91 = arith.truncf %90 : vector<8x16xf32> to vector<8x16xbf16>
    %92 = vector.extract_strided_slice %42 {offsets = [8, 32], sizes = [8, 16], strides = [1, 1]} : vector<16x96xf32> to vector<8x16xf32>
    %93 = arith.truncf %92 : vector<8x16xf32> to vector<8x16xbf16>
    %94 = vector.extract_strided_slice %42 {offsets = [8, 64], sizes = [8, 16], strides = [1, 1]} : vector<16x96xf32> to vector<8x16xf32>
    %95 = arith.truncf %94 : vector<8x16xf32> to vector<8x16xbf16>
    %cst_36 = arith.constant dense<0.000000e+00> : vector<8x8xf32>
    %96 = tpu.matmul %91, %93, %cst_36 {dimension_numbers = #tpu.dot_dimension_numbers<[1], [1], [0], [0], [0, 0, 1, 0], [], []>} : vector<8x16xbf16>, vector<8x16xbf16>, vector<8x8xf32> -> vector<8x8xf32>
    %cst_37 = arith.constant dense<0xFF800000> : vector<8xf32>
    %97 = vector.multi_reduction <maximumf>, %96, %cst_37 [1] : vector<8x8xf32> to vector<8xf32>
    %98 = vector.shape_cast %97 : vector<8xf32> to vector<8x1xf32>
    %99 = vector.broadcast %98 : vector<8x1xf32> to vector<8x8xf32>
    %100 = arith.subf %96, %99 : vector<8x8xf32>
    %101 = math.exp %100 : vector<8x8xf32>
    %cst_38 = arith.constant dense<0.000000e+00> : vector<8xf32>
    %102 = vector.multi_reduction <add>, %101, %cst_38 [1] : vector<8x8xf32> to vector<8xf32>
    %103 = vector.shape_cast %102 : vector<8xf32> to vector<8x1xf32>
    %104 = tpu.reciprocal %103 {approx = true} : vector<8x1xf32> -> vector<8x1xf32>
    %105 = vector.broadcast %104 : vector<8x1xf32> to vector<8x8xf32>
    %106 = arith.mulf %101, %105 : vector<8x8xf32>
    %107 = arith.truncf %106 : vector<8x8xf32> to vector<8x8xbf16>
    %cst_39 = arith.constant dense<0.000000e+00> : vector<8x16xf32>
    %108 = tpu.matmul %107, %95, %cst_39 {dimension_numbers = #tpu.dot_dimension_numbers<[1], [0], [0], [1], [0, 0, 1, 1], [], []>} : vector<8x8xbf16>, vector<8x16xbf16>, vector<8x16xf32> -> vector<8x16xf32>
    %c0_40 = arith.constant 0 : index
    %c0_41 = arith.constant 0 : index
    %c0_42 = arith.constant 0 : index
    %109 = vector.load %arg8[%c0_40, %c0_41, %c0_42] : memref<2x32x32xbf16, #tpu.memory_space<vmem>>, vector<1x16x32xbf16>
    %110 = vector.shape_cast %109 : vector<1x16x32xbf16> to vector<16x32xbf16>
    %111 = arith.truncf %108 : vector<8x16xf32> to vector<8x16xbf16>
    %cst_43 = arith.constant dense<0.000000e+00> : vector<8x32xf32>
    %112 = tpu.matmul %111, %110, %cst_43 {dimension_numbers = #tpu.dot_dimension_numbers<[1], [0], [0], [1], [0, 0, 1, 1], [], []>} : vector<8x16xbf16>, vector<16x32xbf16>, vector<8x32xf32> -> vector<8x32xf32>
    %113 = vector.extract_strided_slice %42 {offsets = [8, 16], sizes = [8, 16], strides = [1, 1]} : vector<16x96xf32> to vector<8x16xf32>
    %114 = arith.truncf %113 : vector<8x16xf32> to vector<8x16xbf16>
    %115 = vector.extract_strided_slice %42 {offsets = [8, 48], sizes = [8, 16], strides = [1, 1]} : vector<16x96xf32> to vector<8x16xf32>
    %116 = arith.truncf %115 : vector<8x16xf32> to vector<8x16xbf16>
    %117 = vector.extract_strided_slice %42 {offsets = [8, 80], sizes = [8, 16], strides = [1, 1]} : vector<16x96xf32> to vector<8x16xf32>
    %118 = arith.truncf %117 : vector<8x16xf32> to vector<8x16xbf16>
    %cst_44 = arith.constant dense<0.000000e+00> : vector<8x8xf32>
    %119 = tpu.matmul %114, %116, %cst_44 {dimension_numbers = #tpu.dot_dimension_numbers<[1], [1], [0], [0], [0, 0, 1, 0], [], []>} : vector<8x16xbf16>, vector<8x16xbf16>, vector<8x8xf32> -> vector<8x8xf32>
    %cst_45 = arith.constant dense<0xFF800000> : vector<8xf32>
    %120 = vector.multi_reduction <maximumf>, %119, %cst_45 [1] : vector<8x8xf32> to vector<8xf32>
    %121 = vector.shape_cast %120 : vector<8xf32> to vector<8x1xf32>
    %122 = vector.broadcast %121 : vector<8x1xf32> to vector<8x8xf32>
    %123 = arith.subf %119, %122 : vector<8x8xf32>
    %124 = math.exp %123 : vector<8x8xf32>
    %cst_46 = arith.constant dense<0.000000e+00> : vector<8xf32>
    %125 = vector.multi_reduction <add>, %124, %cst_46 [1] : vector<8x8xf32> to vector<8xf32>
    %126 = vector.shape_cast %125 : vector<8xf32> to vector<8x1xf32>
    %127 = tpu.reciprocal %126 {approx = true} : vector<8x1xf32> -> vector<8x1xf32>
    %128 = vector.broadcast %127 : vector<8x1xf32> to vector<8x8xf32>
    %129 = arith.mulf %124, %128 : vector<8x8xf32>
    %130 = arith.truncf %129 : vector<8x8xf32> to vector<8x8xbf16>
    %cst_47 = arith.constant dense<0.000000e+00> : vector<8x16xf32>
    %131 = tpu.matmul %130, %118, %cst_47 {dimension_numbers = #tpu.dot_dimension_numbers<[1], [0], [0], [1], [0, 0, 1, 1], [], []>} : vector<8x8xbf16>, vector<8x16xbf16>, vector<8x16xf32> -> vector<8x16xf32>
    %c0_48 = arith.constant 0 : index
    %c16_49 = arith.constant 16 : index
    %c0_50 = arith.constant 0 : index
    %132 = vector.load %arg8[%c0_48, %c16_49, %c0_50] : memref<2x32x32xbf16, #tpu.memory_space<vmem>>, vector<1x16x32xbf16>
    %133 = vector.shape_cast %132 : vector<1x16x32xbf16> to vector<16x32xbf16>
    %134 = arith.truncf %131 : vector<8x16xf32> to vector<8x16xbf16>
    %cst_51 = arith.constant dense<0.000000e+00> : vector<8x32xf32>
    %135 = tpu.matmul %134, %133, %cst_51 {dimension_numbers = #tpu.dot_dimension_numbers<[1], [0], [0], [1], [0, 0, 1, 1], [], []>} : vector<8x16xbf16>, vector<16x32xbf16>, vector<8x32xf32> -> vector<8x32xf32>
    %136 = arith.addf %112, %135 : vector<8x32xf32>
    %137 = tpu.concatenate %89, %136 in 0 : vector<8x32xf32>, vector<8x32xf32> -> vector<16x32xf32>
    %c0_52 = arith.constant 0 : index
    %c0_53 = arith.constant 0 : index
    %c0_54 = arith.constant 0 : index
    %138 = vector.load %arg9[%c0_52, %c0_53, %c0_54] : memref<2x1x32xf32, #tpu.memory_space<vmem>>, vector<1x1x32xf32>
    %139 = vector.shape_cast %138 : vector<1x1x32xf32> to vector<1x32xf32>
    %140 = vector.broadcast %139 : vector<1x32xf32> to vector<16x32xf32>
    %141 = arith.addf %137, %140 : vector<16x32xf32>
    %142 = arith.addf %141, %34 : vector<16x32xf32>
    %c0_55 = arith.constant 0 : index
    %c0_56 = arith.constant 0 : index
    %c0_57 = arith.constant 0 : index
    %143 = vector.load %arg10[%c0_55, %c0_56, %c0_57] : memref<2x1x32xf32, #tpu.memory_space<vmem>>, vector<1x1x32xf32>
    %144 = vector.shape_cast %143 : vector<1x1x32xf32> to vector<1x32xf32>
    %c0_58 = arith.constant 0 : index
    %c0_59 = arith.constant 0 : index
    %c0_60 = arith.constant 0 : index
    %145 = vector.load %arg11[%c0_58, %c0_59, %c0_60] : memref<2x1x32xf32, #tpu.memory_space<vmem>>, vector<1x1x32xf32>
    %146 = vector.shape_cast %145 : vector<1x1x32xf32> to vector<1x32xf32>
    %cst_61 = arith.constant dense<0.000000e+00> : vector<16xf32>
    %147 = vector.multi_reduction <add>, %142, %cst_61 [1] : vector<16x32xf32> to vector<16xf32>
    %148 = vector.shape_cast %147 : vector<16xf32> to vector<16x1xf32>
    %cst_62 = arith.constant 3.200000e+01 : f32
    %149 = vector.broadcast %cst_62 : f32 to vector<16x1xf32>
    %150 = arith.divf %148, %149 : vector<16x1xf32>
    %151 = vector.broadcast %150 : vector<16x1xf32> to vector<16x32xf32>
    %152 = arith.subf %142, %151 : vector<16x32xf32>
    %153 = arith.mulf %152, %152 : vector<16x32xf32>
    %cst_63 = arith.constant dense<0.000000e+00> : vector<16xf32>
    %154 = vector.multi_reduction <add>, %153, %cst_63 [1] : vector<16x32xf32> to vector<16xf32>
    %155 = vector.shape_cast %154 : vector<16xf32> to vector<16x1xf32>
    %cst_64 = arith.constant 3.200000e+01 : f32
    %156 = vector.broadcast %cst_64 : f32 to vector<16x1xf32>
    %157 = arith.divf %155, %156 : vector<16x1xf32>
    %158 = vector.broadcast %150 : vector<16x1xf32> to vector<16x32xf32>
    %159 = arith.subf %142, %158 : vector<16x32xf32>
    %cst_65 = arith.constant 9.99999996E-13 : f32
    %160 = vector.broadcast %cst_65 : f32 to vector<16x1xf32>
    %161 = arith.addf %157, %160 : vector<16x1xf32>
    %162 = math.rsqrt %161 : vector<16x1xf32>
    %163 = vector.broadcast %162 : vector<16x1xf32> to vector<16x32xf32>
    %164 = arith.mulf %159, %163 : vector<16x32xf32>
    %165 = vector.broadcast %144 : vector<1x32xf32> to vector<16x32xf32>
    %166 = arith.mulf %164, %165 : vector<16x32xf32>
    %167 = vector.broadcast %146 : vector<1x32xf32> to vector<16x32xf32>
    %168 = arith.addf %166, %167 : vector<16x32xf32>
    %169 = arith.truncf %168 : vector<16x32xf32> to vector<16x32xbf16>
    %c0_66 = arith.constant 0 : index
    %c0_67 = arith.constant 0 : index
    %c0_68 = arith.constant 0 : index
    %170 = vector.load %arg12[%c0_66, %c0_67, %c0_68] : memref<2x32x64xbf16, #tpu.memory_space<vmem>>, vector<1x32x64xbf16>
    %171 = vector.shape_cast %170 : vector<1x32x64xbf16> to vector<32x64xbf16>
    %cst_69 = arith.constant dense<0.000000e+00> : vector<16x64xf32>
    %172 = tpu.matmul %169, %171, %cst_69 {dimension_numbers = #tpu.dot_dimension_numbers<[1], [0], [0], [1], [0, 0, 1, 1], [], []>} : vector<16x32xbf16>, vector<32x64xbf16>, vector<16x64xf32> -> vector<16x64xf32>
    %c0_70 = arith.constant 0 : index
    %c0_71 = arith.constant 0 : index
    %c0_72 = arith.constant 0 : index
    %173 = vector.load %arg13[%c0_70, %c0_71, %c0_72] : memref<2x1x64xf32, #tpu.memory_space<vmem>>, vector<1x1x64xf32>
    %174 = vector.shape_cast %173 : vector<1x1x64xf32> to vector<1x64xf32>
    %175 = vector.broadcast %174 : vector<1x64xf32> to vector<16x64xf32>
    %176 = arith.addf %172, %175 : vector<16x64xf32>
    %cst_73 = arith.constant 5.000000e-01 : f32
    %177 = vector.broadcast %cst_73 : f32 to vector<16x64xf32>
    %178 = arith.mulf %177, %176 : vector<16x64xf32>
    %cst_74 = arith.constant 4.471500e-02 : f32
    %179 = vector.broadcast %cst_74 : f32 to vector<16x64xf32>
    %180 = arith.mulf %179, %176 : vector<16x64xf32>
    %181 = arith.mulf %180, %176 : vector<16x64xf32>
    %182 = arith.mulf %181, %176 : vector<16x64xf32>
    %183 = arith.addf %176, %182 : vector<16x64xf32>
    %cst_75 = arith.constant 0.797884583 : f32
    %184 = vector.broadcast %cst_75 : f32 to vector<16x64xf32>
    %185 = arith.mulf %184, %183 : vector<16x64xf32>
    %186 = math.tanh %185 : vector<16x64xf32>
    %cst_76 = arith.constant 1.000000e+00 : f32
    %187 = vector.broadcast %cst_76 : f32 to vector<16x64xf32>
    %188 = arith.addf %187, %186 : vector<16x64xf32>
    %189 = arith.mulf %178, %188 : vector<16x64xf32>
    %190 = arith.truncf %189 : vector<16x64xf32> to vector<16x64xbf16>
    %c0_77 = arith.constant 0 : index
    %c0_78 = arith.constant 0 : index
    %c0_79 = arith.constant 0 : index
    %191 = vector.load %arg14[%c0_77, %c0_78, %c0_79] : memref<2x64x32xbf16, #tpu.memory_space<vmem>>, vector<1x64x32xbf16>
    %192 = vector.shape_cast %191 : vector<1x64x32xbf16> to vector<64x32xbf16>
    %cst_80 = arith.constant dense<0.000000e+00> : vector<16x32xf32>
    %193 = tpu.matmul %190, %192, %cst_80 {dimension_numbers = #tpu.dot_dimension_numbers<[1], [0], [0], [1], [0, 0, 1, 1], [], []>} : vector<16x64xbf16>, vector<64x32xbf16>, vector<16x32xf32> -> vector<16x32xf32>
    %c0_81 = arith.constant 0 : index
    %c0_82 = arith.constant 0 : index
    %c0_83 = arith.constant 0 : index
    %194 = vector.load %arg15[%c0_81, %c0_82, %c0_83] : memref<2x1x32xf32, #tpu.memory_space<vmem>>, vector<1x1x32xf32>
    %195 = vector.shape_cast %194 : vector<1x1x32xf32> to vector<1x32xf32>
    %196 = vector.broadcast %195 : vector<1x32xf32> to vector<16x32xf32>
    %197 = arith.addf %193, %196 : vector<16x32xf32>
    %198 = arith.addf %197, %168 : vector<16x32xf32>
    %c0_84 = arith.constant 0 : index
    %c0_85 = arith.constant 0 : index
    %c0_86 = arith.constant 0 : index
    %199 = vector.load %arg16[%c0_84, %c0_85, %c0_86] : memref<2x1x32xf32, #tpu.memory_space<vmem>>, vector<1x1x32xf32>
    %200 = vector.shape_cast %199 : vector<1x1x32xf32> to vector<1x32xf32>
    %c0_87 = arith.constant 0 : index
    %c0_88 = arith.constant 0 : index
    %c0_89 = arith.constant 0 : index
    %201 = vector.load %arg17[%c0_87, %c0_88, %c0_89] : memref<2x1x32xf32, #tpu.memory_space<vmem>>, vector<1x1x32xf32>
    %202 = vector.shape_cast %201 : vector<1x1x32xf32> to vector<1x32xf32>
    %cst_90 = arith.constant dense<0.000000e+00> : vector<16xf32>
    %203 = vector.multi_reduction <add>, %198, %cst_90 [1] : vector<16x32xf32> to vector<16xf32>
    %204 = vector.shape_cast %203 : vector<16xf32> to vector<16x1xf32>
    %cst_91 = arith.constant 3.200000e+01 : f32
    %205 = vector.broadcast %cst_91 : f32 to vector<16x1xf32>
    %206 = arith.divf %204, %205 : vector<16x1xf32>
    %207 = vector.broadcast %206 : vector<16x1xf32> to vector<16x32xf32>
    %208 = arith.subf %198, %207 : vector<16x32xf32>
    %209 = arith.mulf %208, %208 : vector<16x32xf32>
    %cst_92 = arith.constant dense<0.000000e+00> : vector<16xf32>
    %210 = vector.multi_reduction <add>, %209, %cst_92 [1] : vector<16x32xf32> to vector<16xf32>
    %211 = vector.shape_cast %210 : vector<16xf32> to vector<16x1xf32>
    %cst_93 = arith.constant 3.200000e+01 : f32
    %212 = vector.broadcast %cst_93 : f32 to vector<16x1xf32>
    %213 = arith.divf %211, %212 : vector<16x1xf32>
    %214 = vector.broadcast %206 : vector<16x1xf32> to vector<16x32xf32>
    %215 = arith.subf %198, %214 : vector<16x32xf32>
    %cst_94 = arith.constant 9.99999996E-13 : f32
    %216 = vector.broadcast %cst_94 : f32 to vector<16x1xf32>
    %217 = arith.addf %213, %216 : vector<16x1xf32>
    %218 = math.rsqrt %217 : vector<16x1xf32>
    %219 = vector.broadcast %218 : vector<16x1xf32> to vector<16x32xf32>
    %220 = arith.mulf %215, %219 : vector<16x32xf32>
    %221 = vector.broadcast %200 : vector<1x32xf32> to vector<16x32xf32>
    %222 = arith.mulf %220, %221 : vector<16x32xf32>
    %223 = vector.broadcast %202 : vector<1x32xf32> to vector<16x32xf32>
    %224 = arith.addf %222, %223 : vector<16x32xf32>
    %225 = arith.truncf %224 : vector<16x32xf32> to vector<16x32xbf16>
    %c1 = arith.constant 1 : index
    %c0_95 = arith.constant 0 : index
    %c0_96 = arith.constant 0 : index
    %226 = vector.load %arg6[%c1, %c0_95, %c0_96] : memref<2x32x96xbf16, #tpu.memory_space<vmem>>, vector<1x32x96xbf16>
    %227 = vector.shape_cast %226 : vector<1x32x96xbf16> to vector<32x96xbf16>
    %cst_97 = arith.constant dense<0.000000e+00> : vector<16x96xf32>
    %228 = tpu.matmul %225, %227, %cst_97 {dimension_numbers = #tpu.dot_dimension_numbers<[1], [0], [0], [1], [0, 0, 1, 1], [], []>} : vector<16x32xbf16>, vector<32x96xbf16>, vector<16x96xf32> -> vector<16x96xf32>
    %c1_98 = arith.constant 1 : index
    %c0_99 = arith.constant 0 : index
    %c0_100 = arith.constant 0 : index
    %229 = vector.load %arg7[%c1_98, %c0_99, %c0_100] : memref<2x1x96xf32, #tpu.memory_space<vmem>>, vector<1x1x96xf32>
    %230 = vector.shape_cast %229 : vector<1x1x96xf32> to vector<1x96xf32>
    %231 = vector.broadcast %230 : vector<1x96xf32> to vector<16x96xf32>
    %232 = arith.addf %228, %231 : vector<16x96xf32>
    %233 = vector.extract_strided_slice %232 {offsets = [0, 0], sizes = [8, 16], strides = [1, 1]} : vector<16x96xf32> to vector<8x16xf32>
    %234 = arith.truncf %233 : vector<8x16xf32> to vector<8x16xbf16>
    %235 = vector.extract_strided_slice %232 {offsets = [0, 32], sizes = [8, 16], strides = [1, 1]} : vector<16x96xf32> to vector<8x16xf32>
    %236 = arith.truncf %235 : vector<8x16xf32> to vector<8x16xbf16>
    %237 = vector.extract_strided_slice %232 {offsets = [0, 64], sizes = [8, 16], strides = [1, 1]} : vector<16x96xf32> to vector<8x16xf32>
    %238 = arith.truncf %237 : vector<8x16xf32> to vector<8x16xbf16>
    %cst_101 = arith.constant dense<0.000000e+00> : vector<8x8xf32>
    %239 = tpu.matmul %234, %236, %cst_101 {dimension_numbers = #tpu.dot_dimension_numbers<[1], [1], [0], [0], [0, 0, 1, 0], [], []>} : vector<8x16xbf16>, vector<8x16xbf16>, vector<8x8xf32> -> vector<8x8xf32>
    %cst_102 = arith.constant dense<0xFF800000> : vector<8xf32>
    %240 = vector.multi_reduction <maximumf>, %239, %cst_102 [1] : vector<8x8xf32> to vector<8xf32>
    %241 = vector.shape_cast %240 : vector<8xf32> to vector<8x1xf32>
    %242 = vector.broadcast %241 : vector<8x1xf32> to vector<8x8xf32>
    %243 = arith.subf %239, %242 : vector<8x8xf32>
    %244 = math.exp %243 : vector<8x8xf32>
    %cst_103 = arith.constant dense<0.000000e+00> : vector<8xf32>
    %245 = vector.multi_reduction <add>, %244, %cst_103 [1] : vector<8x8xf32> to vector<8xf32>
    %246 = vector.shape_cast %245 : vector<8xf32> to vector<8x1xf32>
    %247 = tpu.reciprocal %246 {approx = true} : vector<8x1xf32> -> vector<8x1xf32>
    %248 = vector.broadcast %247 : vector<8x1xf32> to vector<8x8xf32>
    %249 = arith.mulf %244, %248 : vector<8x8xf32>
    %250 = arith.truncf %249 : vector<8x8xf32> to vector<8x8xbf16>
    %cst_104 = arith.constant dense<0.000000e+00> : vector<8x16xf32>
    %251 = tpu.matmul %250, %238, %cst_104 {dimension_numbers = #tpu.dot_dimension_numbers<[1], [0], [0], [1], [0, 0, 1, 1], [], []>} : vector<8x8xbf16>, vector<8x16xbf16>, vector<8x16xf32> -> vector<8x16xf32>
    %c1_105 = arith.constant 1 : index
    %c0_106 = arith.constant 0 : index
    %c0_107 = arith.constant 0 : index
    %252 = vector.load %arg8[%c1_105, %c0_106, %c0_107] : memref<2x32x32xbf16, #tpu.memory_space<vmem>>, vector<1x16x32xbf16>
    %253 = vector.shape_cast %252 : vector<1x16x32xbf16> to vector<16x32xbf16>
    %254 = arith.truncf %251 : vector<8x16xf32> to vector<8x16xbf16>
    %cst_108 = arith.constant dense<0.000000e+00> : vector<8x32xf32>
    %255 = tpu.matmul %254, %253, %cst_108 {dimension_numbers = #tpu.dot_dimension_numbers<[1], [0], [0], [1], [0, 0, 1, 1], [], []>} : vector<8x16xbf16>, vector<16x32xbf16>, vector<8x32xf32> -> vector<8x32xf32>
    %256 = vector.extract_strided_slice %232 {offsets = [0, 16], sizes = [8, 16], strides = [1, 1]} : vector<16x96xf32> to vector<8x16xf32>
    %257 = arith.truncf %256 : vector<8x16xf32> to vector<8x16xbf16>
    %258 = vector.extract_strided_slice %232 {offsets = [0, 48], sizes = [8, 16], strides = [1, 1]} : vector<16x96xf32> to vector<8x16xf32>
    %259 = arith.truncf %258 : vector<8x16xf32> to vector<8x16xbf16>
    %260 = vector.extract_strided_slice %232 {offsets = [0, 80], sizes = [8, 16], strides = [1, 1]} : vector<16x96xf32> to vector<8x16xf32>
    %261 = arith.truncf %260 : vector<8x16xf32> to vector<8x16xbf16>
    %cst_109 = arith.constant dense<0.000000e+00> : vector<8x8xf32>
    %262 = tpu.matmul %257, %259, %cst_109 {dimension_numbers = #tpu.dot_dimension_numbers<[1], [1], [0], [0], [0, 0, 1, 0], [], []>} : vector<8x16xbf16>, vector<8x16xbf16>, vector<8x8xf32> -> vector<8x8xf32>
    %cst_110 = arith.constant dense<0xFF800000> : vector<8xf32>
    %263 = vector.multi_reduction <maximumf>, %262, %cst_110 [1] : vector<8x8xf32> to vector<8xf32>
    %264 = vector.shape_cast %263 : vector<8xf32> to vector<8x1xf32>
    %265 = vector.broadcast %264 : vector<8x1xf32> to vector<8x8xf32>
    %266 = arith.subf %262, %265 : vector<8x8xf32>
    %267 = math.exp %266 : vector<8x8xf32>
    %cst_111 = arith.constant dense<0.000000e+00> : vector<8xf32>
    %268 = vector.multi_reduction <add>, %267, %cst_111 [1] : vector<8x8xf32> to vector<8xf32>
    %269 = vector.shape_cast %268 : vector<8xf32> to vector<8x1xf32>
    %270 = tpu.reciprocal %269 {approx = true} : vector<8x1xf32> -> vector<8x1xf32>
    %271 = vector.broadcast %270 : vector<8x1xf32> to vector<8x8xf32>
    %272 = arith.mulf %267, %271 : vector<8x8xf32>
    %273 = arith.truncf %272 : vector<8x8xf32> to vector<8x8xbf16>
    %cst_112 = arith.constant dense<0.000000e+00> : vector<8x16xf32>
    %274 = tpu.matmul %273, %261, %cst_112 {dimension_numbers = #tpu.dot_dimension_numbers<[1], [0], [0], [1], [0, 0, 1, 1], [], []>} : vector<8x8xbf16>, vector<8x16xbf16>, vector<8x16xf32> -> vector<8x16xf32>
    %c1_113 = arith.constant 1 : index
    %c16_114 = arith.constant 16 : index
    %c0_115 = arith.constant 0 : index
    %275 = vector.load %arg8[%c1_113, %c16_114, %c0_115] : memref<2x32x32xbf16, #tpu.memory_space<vmem>>, vector<1x16x32xbf16>
    %276 = vector.shape_cast %275 : vector<1x16x32xbf16> to vector<16x32xbf16>
    %277 = arith.truncf %274 : vector<8x16xf32> to vector<8x16xbf16>
    %cst_116 = arith.constant dense<0.000000e+00> : vector<8x32xf32>
    %278 = tpu.matmul %277, %276, %cst_116 {dimension_numbers = #tpu.dot_dimension_numbers<[1], [0], [0], [1], [0, 0, 1, 1], [], []>} : vector<8x16xbf16>, vector<16x32xbf16>, vector<8x32xf32> -> vector<8x32xf32>
    %279 = arith.addf %255, %278 : vector<8x32xf32>
    %280 = vector.extract_strided_slice %232 {offsets = [8, 0], sizes = [8, 16], strides = [1, 1]} : vector<16x96xf32> to vector<8x16xf32>
    %281 = arith.truncf %280 : vector<8x16xf32> to vector<8x16xbf16>
    %282 = vector.extract_strided_slice %232 {offsets = [8, 32], sizes = [8, 16], strides = [1, 1]} : vector<16x96xf32> to vector<8x16xf32>
    %283 = arith.truncf %282 : vector<8x16xf32> to vector<8x16xbf16>
    %284 = vector.extract_strided_slice %232 {offsets = [8, 64], sizes = [8, 16], strides = [1, 1]} : vector<16x96xf32> to vector<8x16xf32>
    %285 = arith.truncf %284 : vector<8x16xf32> to vector<8x16xbf16>
    %cst_117 = arith.constant dense<0.000000e+00> : vector<8x8xf32>
    %286 = tpu.matmul %281, %283, %cst_117 {dimension_numbers = #tpu.dot_dimension_numbers<[1], [1], [0], [0], [0, 0, 1, 0], [], []>} : vector<8x16xbf16>, vector<8x16xbf16>, vector<8x8xf32> -> vector<8x8xf32>
    %cst_118 = arith.constant dense<0xFF800000> : vector<8xf32>
    %287 = vector.multi_reduction <maximumf>, %286, %cst_118 [1] : vector<8x8xf32> to vector<8xf32>
    %288 = vector.shape_cast %287 : vector<8xf32> to vector<8x1xf32>
    %289 = vector.broadcast %288 : vector<8x1xf32> to vector<8x8xf32>
    %290 = arith.subf %286, %289 : vector<8x8xf32>
    %291 = math.exp %290 : vector<8x8xf32>
    %cst_119 = arith.constant dense<0.000000e+00> : vector<8xf32>
    %292 = vector.multi_reduction <add>, %291, %cst_119 [1] : vector<8x8xf32> to vector<8xf32>
    %293 = vector.shape_cast %292 : vector<8xf32> to vector<8x1xf32>
    %294 = tpu.reciprocal %293 {approx = true} : vector<8x1xf32> -> vector<8x1xf32>
    %295 = vector.broadcast %294 : vector<8x1xf32> to vector<8x8xf32>
    %296 = arith.mulf %291, %295 : vector<8x8xf32>
    %297 = arith.truncf %296 : vector<8x8xf32> to vector<8x8xbf16>
    %cst_120 = arith.constant dense<0.000000e+00> : vector<8x16xf32>
    %298 = tpu.matmul %297, %285, %cst_120 {dimension_numbers = #tpu.dot_dimension_numbers<[1], [0], [0], [1], [0, 0, 1, 1], [], []>} : vector<8x8xbf16>, vector<8x16xbf16>, vector<8x16xf32> -> vector<8x16xf32>
    %c1_121 = arith.constant 1 : index
    %c0_122 = arith.constant 0 : index
    %c0_123 = arith.constant 0 : index
    %299 = vector.load %arg8[%c1_121, %c0_122, %c0_123] : memref<2x32x32xbf16, #tpu.memory_space<vmem>>, vector<1x16x32xbf16>
    %300 = vector.shape_cast %299 : vector<1x16x32xbf16> to vector<16x32xbf16>
    %301 = arith.truncf %298 : vector<8x16xf32> to vector<8x16xbf16>
    %cst_124 = arith.constant dense<0.000000e+00> : vector<8x32xf32>
    %302 = tpu.matmul %301, %300, %cst_124 {dimension_numbers = #tpu.dot_dimension_numbers<[1], [0], [0], [1], [0, 0, 1, 1], [], []>} : vector<8x16xbf16>, vector<16x32xbf16>, vector<8x32xf32> -> vector<8x32xf32>
    %303 = vector.extract_strided_slice %232 {offsets = [8, 16], sizes = [8, 16], strides = [1, 1]} : vector<16x96xf32> to vector<8x16xf32>
    %304 = arith.truncf %303 : vector<8x16xf32> to vector<8x16xbf16>
    %305 = vector.extract_strided_slice %232 {offsets = [8, 48], sizes = [8, 16], strides = [1, 1]} : vector<16x96xf32> to vector<8x16xf32>
    %306 = arith.truncf %305 : vector<8x16xf32> to vector<8x16xbf16>
    %307 = vector.extract_strided_slice %232 {offsets = [8, 80], sizes = [8, 16], strides = [1, 1]} : vector<16x96xf32> to vector<8x16xf32>
    %308 = arith.truncf %307 : vector<8x16xf32> to vector<8x16xbf16>
    %cst_125 = arith.constant dense<0.000000e+00> : vector<8x8xf32>
    %309 = tpu.matmul %304, %306, %cst_125 {dimension_numbers = #tpu.dot_dimension_numbers<[1], [1], [0], [0], [0, 0, 1, 0], [], []>} : vector<8x16xbf16>, vector<8x16xbf16>, vector<8x8xf32> -> vector<8x8xf32>
    %cst_126 = arith.constant dense<0xFF800000> : vector<8xf32>
    %310 = vector.multi_reduction <maximumf>, %309, %cst_126 [1] : vector<8x8xf32> to vector<8xf32>
    %311 = vector.shape_cast %310 : vector<8xf32> to vector<8x1xf32>
    %312 = vector.broadcast %311 : vector<8x1xf32> to vector<8x8xf32>
    %313 = arith.subf %309, %312 : vector<8x8xf32>
    %314 = math.exp %313 : vector<8x8xf32>
    %cst_127 = arith.constant dense<0.000000e+00> : vector<8xf32>
    %315 = vector.multi_reduction <add>, %314, %cst_127 [1] : vector<8x8xf32> to vector<8xf32>
    %316 = vector.shape_cast %315 : vector<8xf32> to vector<8x1xf32>
    %317 = tpu.reciprocal %316 {approx = true} : vector<8x1xf32> -> vector<8x1xf32>
    %318 = vector.broadcast %317 : vector<8x1xf32> to vector<8x8xf32>
    %319 = arith.mulf %314, %318 : vector<8x8xf32>
    %320 = arith.truncf %319 : vector<8x8xf32> to vector<8x8xbf16>
    %cst_128 = arith.constant dense<0.000000e+00> : vector<8x16xf32>
    %321 = tpu.matmul %320, %308, %cst_128 {dimension_numbers = #tpu.dot_dimension_numbers<[1], [0], [0], [1], [0, 0, 1, 1], [], []>} : vector<8x8xbf16>, vector<8x16xbf16>, vector<8x16xf32> -> vector<8x16xf32>
    %c1_129 = arith.constant 1 : index
    %c16_130 = arith.constant 16 : index
    %c0_131 = arith.constant 0 : index
    %322 = vector.load %arg8[%c1_129, %c16_130, %c0_131] : memref<2x32x32xbf16, #tpu.memory_space<vmem>>, vector<1x16x32xbf16>
    %323 = vector.shape_cast %322 : vector<1x16x32xbf16> to vector<16x32xbf16>
    %324 = arith.truncf %321 : vector<8x16xf32> to vector<8x16xbf16>
    %cst_132 = arith.constant dense<0.000000e+00> : vector<8x32xf32>
    %325 = tpu.matmul %324, %323, %cst_132 {dimension_numbers = #tpu.dot_dimension_numbers<[1], [0], [0], [1], [0, 0, 1, 1], [], []>} : vector<8x16xbf16>, vector<16x32xbf16>, vector<8x32xf32> -> vector<8x32xf32>
    %326 = arith.addf %302, %325 : vector<8x32xf32>
    %327 = tpu.concatenate %279, %326 in 0 : vector<8x32xf32>, vector<8x32xf32> -> vector<16x32xf32>
    %c1_133 = arith.constant 1 : index
    %c0_134 = arith.constant 0 : index
    %c0_135 = arith.constant 0 : index
    %328 = vector.load %arg9[%c1_133, %c0_134, %c0_135] : memref<2x1x32xf32, #tpu.memory_space<vmem>>, vector<1x1x32xf32>
    %329 = vector.shape_cast %328 : vector<1x1x32xf32> to vector<1x32xf32>
    %330 = vector.broadcast %329 : vector<1x32xf32> to vector<16x32xf32>
    %331 = arith.addf %327, %330 : vector<16x32xf32>
    %332 = arith.addf %331, %224 : vector<16x32xf32>
    %c1_136 = arith.constant 1 : index
    %c0_137 = arith.constant 0 : index
    %c0_138 = arith.constant 0 : index
    %333 = vector.load %arg10[%c1_136, %c0_137, %c0_138] : memref<2x1x32xf32, #tpu.memory_space<vmem>>, vector<1x1x32xf32>
    %334 = vector.shape_cast %333 : vector<1x1x32xf32> to vector<1x32xf32>
    %c1_139 = arith.constant 1 : index
    %c0_140 = arith.constant 0 : index
    %c0_141 = arith.constant 0 : index
    %335 = vector.load %arg11[%c1_139, %c0_140, %c0_141] : memref<2x1x32xf32, #tpu.memory_space<vmem>>, vector<1x1x32xf32>
    %336 = vector.shape_cast %335 : vector<1x1x32xf32> to vector<1x32xf32>
    %cst_142 = arith.constant dense<0.000000e+00> : vector<16xf32>
    %337 = vector.multi_reduction <add>, %332, %cst_142 [1] : vector<16x32xf32> to vector<16xf32>
    %338 = vector.shape_cast %337 : vector<16xf32> to vector<16x1xf32>
    %cst_143 = arith.constant 3.200000e+01 : f32
    %339 = vector.broadcast %cst_143 : f32 to vector<16x1xf32>
    %340 = arith.divf %338, %339 : vector<16x1xf32>
    %341 = vector.broadcast %340 : vector<16x1xf32> to vector<16x32xf32>
    %342 = arith.subf %332, %341 : vector<16x32xf32>
    %343 = arith.mulf %342, %342 : vector<16x32xf32>
    %cst_144 = arith.constant dense<0.000000e+00> : vector<16xf32>
    %344 = vector.multi_reduction <add>, %343, %cst_144 [1] : vector<16x32xf32> to vector<16xf32>
    %345 = vector.shape_cast %344 : vector<16xf32> to vector<16x1xf32>
    %cst_145 = arith.constant 3.200000e+01 : f32
    %346 = vector.broadcast %cst_145 : f32 to vector<16x1xf32>
    %347 = arith.divf %345, %346 : vector<16x1xf32>
    %348 = vector.broadcast %340 : vector<16x1xf32> to vector<16x32xf32>
    %349 = arith.subf %332, %348 : vector<16x32xf32>
    %cst_146 = arith.constant 9.99999996E-13 : f32
    %350 = vector.broadcast %cst_146 : f32 to vector<16x1xf32>
    %351 = arith.addf %347, %350 : vector<16x1xf32>
    %352 = math.rsqrt %351 : vector<16x1xf32>
    %353 = vector.broadcast %352 : vector<16x1xf32> to vector<16x32xf32>
    %354 = arith.mulf %349, %353 : vector<16x32xf32>
    %355 = vector.broadcast %334 : vector<1x32xf32> to vector<16x32xf32>
    %356 = arith.mulf %354, %355 : vector<16x32xf32>
    %357 = vector.broadcast %336 : vector<1x32xf32> to vector<16x32xf32>
    %358 = arith.addf %356, %357 : vector<16x32xf32>
    %359 = arith.truncf %358 : vector<16x32xf32> to vector<16x32xbf16>
    %c1_147 = arith.constant 1 : index
    %c0_148 = arith.constant 0 : index
    %c0_149 = arith.constant 0 : index
    %360 = vector.load %arg12[%c1_147, %c0_148, %c0_149] : memref<2x32x64xbf16, #tpu.memory_space<vmem>>, vector<1x32x64xbf16>
    %361 = vector.shape_cast %360 : vector<1x32x64xbf16> to vector<32x64xbf16>
    %cst_150 = arith.constant dense<0.000000e+00> : vector<16x64xf32>
    %362 = tpu.matmul %359, %361, %cst_150 {dimension_numbers = #tpu.dot_dimension_numbers<[1], [0], [0], [1], [0, 0, 1, 1], [], []>} : vector<16x32xbf16>, vector<32x64xbf16>, vector<16x64xf32> -> vector<16x64xf32>
    %c1_151 = arith.constant 1 : index
    %c0_152 = arith.constant 0 : index
    %c0_153 = arith.constant 0 : index
    %363 = vector.load %arg13[%c1_151, %c0_152, %c0_153] : memref<2x1x64xf32, #tpu.memory_space<vmem>>, vector<1x1x64xf32>
    %364 = vector.shape_cast %363 : vector<1x1x64xf32> to vector<1x64xf32>
    %365 = vector.broadcast %364 : vector<1x64xf32> to vector<16x64xf32>
    %366 = arith.addf %362, %365 : vector<16x64xf32>
    %cst_154 = arith.constant 5.000000e-01 : f32
    %367 = vector.broadcast %cst_154 : f32 to vector<16x64xf32>
    %368 = arith.mulf %367, %366 : vector<16x64xf32>
    %cst_155 = arith.constant 4.471500e-02 : f32
    %369 = vector.broadcast %cst_155 : f32 to vector<16x64xf32>
    %370 = arith.mulf %369, %366 : vector<16x64xf32>
    %371 = arith.mulf %370, %366 : vector<16x64xf32>
    %372 = arith.mulf %371, %366 : vector<16x64xf32>
    %373 = arith.addf %366, %372 : vector<16x64xf32>
    %cst_156 = arith.constant 0.797884583 : f32
    %374 = vector.broadcast %cst_156 : f32 to vector<16x64xf32>
    %375 = arith.mulf %374, %373 : vector<16x64xf32>
    %376 = math.tanh %375 : vector<16x64xf32>
    %cst_157 = arith.constant 1.000000e+00 : f32
    %377 = vector.broadcast %cst_157 : f32 to vector<16x64xf32>
    %378 = arith.addf %377, %376 : vector<16x64xf32>
    %379 = arith.mulf %368, %378 : vector<16x64xf32>
    %380 = arith.truncf %379 : vector<16x64xf32> to vector<16x64xbf16>
    %c1_158 = arith.constant 1 : index
    %c0_159 = arith.constant 0 : index
    %c0_160 = arith.constant 0 : index
    %381 = vector.load %arg14[%c1_158, %c0_159, %c0_160] : memref<2x64x32xbf16, #tpu.memory_space<vmem>>, vector<1x64x32xbf16>
    %382 = vector.shape_cast %381 : vector<1x64x32xbf16> to vector<64x32xbf16>
    %cst_161 = arith.constant dense<0.000000e+00> : vector<16x32xf32>
    %383 = tpu.matmul %380, %382, %cst_161 {dimension_numbers = #tpu.dot_dimension_numbers<[1], [0], [0], [1], [0, 0, 1, 1], [], []>} : vector<16x64xbf16>, vector<64x32xbf16>, vector<16x32xf32> -> vector<16x32xf32>
    %c1_162 = arith.constant 1 : index
    %c0_163 = arith.constant 0 : index
    %c0_164 = arith.constant 0 : index
    %384 = vector.load %arg15[%c1_162, %c0_163, %c0_164] : memref<2x1x32xf32, #tpu.memory_space<vmem>>, vector<1x1x32xf32>
    %385 = vector.shape_cast %384 : vector<1x1x32xf32> to vector<1x32xf32>
    %386 = vector.broadcast %385 : vector<1x32xf32> to vector<16x32xf32>
    %387 = arith.addf %383, %386 : vector<16x32xf32>
    %388 = arith.addf %387, %358 : vector<16x32xf32>
    %c1_165 = arith.constant 1 : index
    %c0_166 = arith.constant 0 : index
    %c0_167 = arith.constant 0 : index
    %389 = vector.load %arg16[%c1_165, %c0_166, %c0_167] : memref<2x1x32xf32, #tpu.memory_space<vmem>>, vector<1x1x32xf32>
    %390 = vector.shape_cast %389 : vector<1x1x32xf32> to vector<1x32xf32>
    %c1_168 = arith.constant 1 : index
    %c0_169 = arith.constant 0 : index
    %c0_170 = arith.constant 0 : index
    %391 = vector.load %arg17[%c1_168, %c0_169, %c0_170] : memref<2x1x32xf32, #tpu.memory_space<vmem>>, vector<1x1x32xf32>
    %392 = vector.shape_cast %391 : vector<1x1x32xf32> to vector<1x32xf32>
    %cst_171 = arith.constant dense<0.000000e+00> : vector<16xf32>
    %393 = vector.multi_reduction <add>, %388, %cst_171 [1] : vector<16x32xf32> to vector<16xf32>
    %394 = vector.shape_cast %393 : vector<16xf32> to vector<16x1xf32>
    %cst_172 = arith.constant 3.200000e+01 : f32
    %395 = vector.broadcast %cst_172 : f32 to vector<16x1xf32>
    %396 = arith.divf %394, %395 : vector<16x1xf32>
    %397 = vector.broadcast %396 : vector<16x1xf32> to vector<16x32xf32>
    %398 = arith.subf %388, %397 : vector<16x32xf32>
    %399 = arith.mulf %398, %398 : vector<16x32xf32>
    %cst_173 = arith.constant dense<0.000000e+00> : vector<16xf32>
    %400 = vector.multi_reduction <add>, %399, %cst_173 [1] : vector<16x32xf32> to vector<16xf32>
    %401 = vector.shape_cast %400 : vector<16xf32> to vector<16x1xf32>
    %cst_174 = arith.constant 3.200000e+01 : f32
    %402 = vector.broadcast %cst_174 : f32 to vector<16x1xf32>
    %403 = arith.divf %401, %402 : vector<16x1xf32>
    %404 = vector.broadcast %396 : vector<16x1xf32> to vector<16x32xf32>
    %405 = arith.subf %388, %404 : vector<16x32xf32>
    %cst_175 = arith.constant 9.99999996E-13 : f32
    %406 = vector.broadcast %cst_175 : f32 to vector<16x1xf32>
    %407 = arith.addf %403, %406 : vector<16x1xf32>
    %408 = math.rsqrt %407 : vector<16x1xf32>
    %409 = vector.broadcast %408 : vector<16x1xf32> to vector<16x32xf32>
    %410 = arith.mulf %405, %409 : vector<16x32xf32>
    %411 = vector.broadcast %390 : vector<1x32xf32> to vector<16x32xf32>
    %412 = arith.mulf %410, %411 : vector<16x32xf32>
    %413 = vector.broadcast %392 : vector<1x32xf32> to vector<16x32xf32>
    %414 = arith.addf %412, %413 : vector<16x32xf32>
    %c0_176 = arith.constant 0 : index
    %c0_177 = arith.constant 0 : index
    %415 = vector.load %arg18[%c0_176, %c0_177] : memref<16x32xf32, #tpu.memory_space<vmem>>, vector<16x32xf32>
    tpu.vector_store %arg18[%c0_176, %c0_177], %414 {strides = array<i32>} : memref<16x32xf32, #tpu.memory_space<vmem>>, vector<16x32xf32>,
    return
  }
  func.func @transform_0(%arg0: i32) -> (i32, i32) {
    %c0_i32 = arith.constant 0 : i32
    %c0_i32_0 = arith.constant 0 : i32
    %c0_i32_1 = arith.constant 0 : i32
    return %c0_i32, %c0_i32_0 : i32, i32
  }
  func.func @transform_1(%arg0: i32) -> (i32, i32) {
    %c0_i32 = arith.constant 0 : i32
    %c0_i32_0 = arith.constant 0 : i32
    %c0_i32_1 = arith.constant 0 : i32
    return %c0_i32, %c0_i32_0 : i32, i32
  }
  func.func @transform_2(%arg0: i32) -> (i32, i32) {
    %c0_i32 = arith.constant 0 : i32
    %c0_i32_0 = arith.constant 0 : i32
    %c0_i32_1 = arith.constant 0 : i32
    return %c0_i32, %c0_i32_0 : i32, i32
  }
  func.func @transform_3(%arg0: i32) -> (i32, i32) {
    %c0_i32 = arith.constant 0 : i32
    %c0_i32_0 = arith.constant 0 : i32
    %c0_i32_1 = arith.constant 0 : i32
    return %c0_i32, %c0_i32_0 : i32, i32
  }
  func.func @transform_4(%arg0: i32) -> (i32, i32) {
    %c0_i32 = arith.constant 0 : i32
    %c0_i32_0 = arith.constant 0 : i32
    %c0_i32_1 = arith.constant 0 : i32
    return %c0_i32, %c0_i32_0 : i32, i32
  }
  func.func @transform_5(%arg0: i32) -> (i32, i32, i32) {
    %c0_i32 = arith.constant 0 : i32
    %c0_i32_0 = arith.constant 0 : i32
    %c0_i32_1 = arith.constant 0 : i32
    %c0_i32_2 = arith.constant 0 : i32
    return %c0_i32, %c0_i32_0, %c0_i32_1 : i32, i32, i32
  }
  func.func @transform_6(%arg0: i32) -> (i32, i32, i32) {
    %c0_i32 = arith.constant 0 : i32
    %c0_i32_0 = arith.constant 0 : i32
    %c0_i32_1 = arith.constant 0 : i32
    %c0_i32_2 = arith.constant 0 : i32
    return %c0_i32, %c0_i32_0, %c0_i32_1 : i32, i32, i32
  }
  func.func @transform_7(%arg0: i32) -> (i32, i32, i32) {
    %c0_i32 = arith.constant 0 : i32
    %c0_i32_0 = arith.constant 0 : i32
    %c0_i32_1 = arith.constant 0 : i32
    %c0_i32_2 = arith.constant 0 : i32
    return %c0_i32, %c0_i32_0, %c0_i32_1 : i32, i32, i32
  }
  func.func @transform_8(%arg0: i32) -> (i32, i32, i32) {
    %c0_i32 = arith.constant 0 : i32
    %c0_i32_0 = arith.constant 0 : i32
    %c0_i32_1 = arith.constant 0 : i32
    %c0_i32_2 = arith.constant 0 : i32
    return %c0_i32, %c0_i32_0, %c0_i32_1 : i32, i32, i32
  }
  func.func @transform_9(%arg0: i32) -> (i32, i32, i32) {
    %c0_i32 = arith.constant 0 : i32
    %c0_i32_0 = arith.constant 0 : i32
    %c0_i32_1 = arith.constant 0 : i32
    %c0_i32_2 = arith.constant 0 : i32
    return %c0_i32, %c0_i32_0, %c0_i32_1 : i32, i32, i32
  }
  func.func @transform_10(%arg0: i32) -> (i32, i32, i32) {
    %c0_i32 = arith.constant 0 : i32
    %c0_i32_0 = arith.constant 0 : i32
    %c0_i32_1 = arith.constant 0 : i32
    %c0_i32_2 = arith.constant 0 : i32
    return %c0_i32, %c0_i32_0, %c0_i32_1 : i32, i32, i32
  }
  func.func @transform_11(%arg0: i32) -> (i32, i32, i32) {
    %c0_i32 = arith.constant 0 : i32
    %c0_i32_0 = arith.constant 0 : i32
    %c0_i32_1 = arith.constant 0 : i32
    %c0_i32_2 = arith.constant 0 : i32
    return %c0_i32, %c0_i32_0, %c0_i32_1 : i32, i32, i32
  }
  func.func @transform_12(%arg0: i32) -> (i32, i32, i32) {
    %c0_i32 = arith.constant 0 : i32
    %c0_i32_0 = arith.constant 0 : i32
    %c0_i32_1 = arith.constant 0 : i32
    %c0_i32_2 = arith.constant 0 : i32
    return %c0_i32, %c0_i32_0, %c0_i32_1 : i32, i32, i32
  }
  func.func @transform_13(%arg0: i32) -> (i32, i32, i32) {
    %c0_i32 = arith.constant 0 : i32
    %c0_i32_0 = arith.constant 0 : i32
    %c0_i32_1 = arith.constant 0 : i32
    %c0_i32_2 = arith.constant 0 : i32
    return %c0_i32, %c0_i32_0, %c0_i32_1 : i32, i32, i32
  }
  func.func @transform_14(%arg0: i32) -> (i32, i32, i32) {
    %c0_i32 = arith.constant 0 : i32
    %c0_i32_0 = arith.constant 0 : i32
    %c0_i32_1 = arith.constant 0 : i32
    %c0_i32_2 = arith.constant 0 : i32
    return %c0_i32, %c0_i32_0, %c0_i32_1 : i32, i32, i32
  }
  func.func @transform_15(%arg0: i32) -> (i32, i32, i32) {
    %c0_i32 = arith.constant 0 : i32
    %c0_i32_0 = arith.constant 0 : i32
    %c0_i32_1 = arith.constant 0 : i32
    %c0_i32_2 = arith.constant 0 : i32
    return %c0_i32, %c0_i32_0, %c0_i32_1 : i32, i32, i32
  }
  func.func @transform_16(%arg0: i32) -> (i32, i32, i32) {
    %c0_i32 = arith.constant 0 : i32
    %c0_i32_0 = arith.constant 0 : i32
    %c0_i32_1 = arith.constant 0 : i32
    %c0_i32_2 = arith.constant 0 : i32
    return %c0_i32, %c0_i32_0, %c0_i32_1 : i32, i32, i32
  }
  func.func @transform_17(%arg0: i32) -> (i32, i32) {
    %c0_i32 = arith.constant 0 : i32
    %c0_i32_0 = arith.constant 0 : i32
    %c0_i32_1 = arith.constant 0 : i32
    return %c0_i32, %c0_i32_0 : i32, i32
  }
}

</mosaic_0001>

<llo_original>
// kernel: bert_embedding_layer_forward.1
$region0: #{bert_embedding_layer_forward.1}
  #allocation0 [shape = 'u32[]', space=smem, size = 0x4, offset = 0x4, fixed_abs, tag = 'smem constant byte address 0x4 - core index']
  #allocation1 [shape = 'u32[72,128]{1,0:T(1,128)}', space=vmem, size = 0x9000, scoped, tag = 'internal scratch']
  %s0 = inlined_call_operand.vmem [shape: s32[16,1], index: 0, kind: input, shape index: {}]
  %s1 = inlined_call_operand.vmem [shape: bf16[128,32], index: 1, kind: input, shape index: {}]
  %s2 = inlined_call_operand.vmem [shape: f32[16,32], index: 2, kind: input, shape index: {}]
  %s3 = inlined_call_operand.vmem [shape: f32[1,32], index: 3, kind: input, shape index: {}]
  %s4 = inlined_call_operand.vmem [shape: f32[1,32], index: 4, kind: input, shape index: {}]
  %s5 = inlined_call_operand.vmem [shape: bf16[2,32,96], index: 5, kind: input, shape index: {}]
  %s6 = inlined_call_operand.vmem [shape: f32[2,1,96], index: 6, kind: input, shape index: {}]
  %s7 = inlined_call_operand.vmem [shape: bf16[2,32,32], index: 7, kind: input, shape index: {}]
  %s8 = inlined_call_operand.vmem [shape: f32[2,1,32], index: 8, kind: input, shape index: {}]
  %s9 = inlined_call_operand.vmem [shape: f32[2,1,32], index: 9, kind: input, shape index: {}]
  %s10 = inlined_call_operand.vmem [shape: f32[2,1,32], index: 10, kind: input, shape index: {}]
  %s11 = inlined_call_operand.vmem [shape: bf16[2,32,64], index: 11, kind: input, shape index: {}]
  %s12 = inlined_call_operand.vmem [shape: f32[2,1,64], index: 12, kind: input, shape index: {}]
  %s13 = inlined_call_operand.vmem [shape: bf16[2,64,32], index: 13, kind: input, shape index: {}]
  %s14 = inlined_call_operand.vmem [shape: f32[2,1,32], index: 14, kind: input, shape index: {}]
  %s15 = inlined_call_operand.vmem [shape: f32[2,1,32], index: 15, kind: input, shape index: {}]
  %s16 = inlined_call_operand.vmem [shape: f32[2,1,32], index: 16, kind: input, shape index: {}]
  %s17 = inlined_call_operand.hbm [shape: f32[16,32], index: 17, kind: output, shape index: {}]
  %s18 = sld [smem:[#allocation0]]
  $region78: #{bert_embedding_layer_forward.1} parent=0
    _
  %s20 = ssub.s32 1, %s18
  %s21 = scalar_select 0, %s20, %s18
  $region1: #{bert_embedding_layer_forward.1} parent=0
    #allocation2 [shape = 'u8[8192]{0}', space=vmem, size = 0x2000, scoped, tag = 'output window, operand 0, single buffered']
    #allocation3 [shape = 's32[1]{0}', space=sflag, size = 0x4, scoped, tag = 'scoped memory for bert_embedding_layer_forward.1']
    %22 = vsyncpa [#allocation3], 0
    // Predicated region
    $region2: #{bert_embedding_layer_forward.1} parent=1 // pred_check
      _
    $region3: #{bert_embedding_layer_forward.1} parent=1 // pred_check_branch
      %24 = sbr.rel (0) target = $region5
    $region4: #{bert_embedding_layer_forward.1} parent=1 // pred_region
      _
    $region5: #{bert_embedding_layer_forward.1} parent=1 // pred_fallthru
      _
    // Predicated region
    $region6: #{bert_embedding_layer_forward.1} parent=1 // pred_check
      _
    $region7: #{bert_embedding_layer_forward.1} parent=1 // pred_check_branch
      %26 = sbr.rel (0) target = $region9
    $region8: #{bert_embedding_layer_forward.1} parent=1 // pred_region
      _
    $region9: #{bert_embedding_layer_forward.1} parent=1 // pred_fallthru
      _
    // Predicated region
    $region10: #{bert_embedding_layer_forward.1} parent=1 // pred_check
      _
    $region11: #{bert_embedding_layer_forward.1} parent=1 // pred_check_branch
      %28 = sbr.rel (0) target = $region13
    $region12: #{bert_embedding_layer_forward.1} parent=1 // pred_region
      _
    $region13: #{bert_embedding_layer_forward.1} parent=1 // pred_fallthru
      _
    // Predicated region
    $region14: #{bert_embedding_layer_forward.1} parent=1 // pred_check
      _
    $region15: #{bert_embedding_layer_forward.1} parent=1 // pred_check_branch
      %30 = sbr.rel (0) target = $region17
    $region16: #{bert_embedding_layer_forward.1} parent=1 // pred_region
      _
    $region17: #{bert_embedding_layer_forward.1} parent=1 // pred_fallthru
      _
    // Predicated region
    $region18: #{bert_embedding_layer_forward.1} parent=1 // pred_check
      _
    $region19: #{bert_embedding_layer_forward.1} parent=1 // pred_check_branch
      %32 = sbr.rel (0) target = $region21
    $region20: #{bert_embedding_layer_forward.1} parent=1 // pred_region
      _
    $region21: #{bert_embedding_layer_forward.1} parent=1 // pred_fallthru
      _
    // Predicated region
    $region22: #{bert_embedding_layer_forward.1} parent=1 // pred_check
      _
    $region23: #{bert_embedding_layer_forward.1} parent=1 // pred_check_branch
      %34 = sbr.rel (0) target = $region25
    $region24: #{bert_embedding_layer_forward.1} parent=1 // pred_region
      _
    $region25: #{bert_embedding_layer_forward.1} parent=1 // pred_fallthru
      _
    // Predicated region
    $region26: #{bert_embedding_layer_forward.1} parent=1 // pred_check
      _
    $region27: #{bert_embedding_layer_forward.1} parent=1 // pred_check_branch
      %36 = sbr.rel (0) target = $region29
    $region28: #{bert_embedding_layer_forward.1} parent=1 // pred_region
      _
    $region29: #{bert_embedding_layer_forward.1} parent=1 // pred_fallthru
      _
    // Predicated region
    $region30: #{bert_embedding_layer_forward.1} parent=1 // pred_check
      _
    $region31: #{bert_embedding_layer_forward.1} parent=1 // pred_check_branch
      %38 = sbr.rel (0) target = $region33
    $region32: #{bert_embedding_layer_forward.1} parent=1 // pred_region
      _
    $region33: #{bert_embedding_layer_forward.1} parent=1 // pred_fallthru
      _
    // Predicated region
    $region34: #{bert_embedding_layer_forward.1} parent=1 // pred_check
      _
    $region35: #{bert_embedding_layer_forward.1} parent=1 // pred_check_branch
      %40 = sbr.rel (0) target = $region37
    $region36: #{bert_embedding_layer_forward.1} parent=1 // pred_region
      _
    $region37: #{bert_embedding_layer_forward.1} parent=1 // pred_fallthru
      _
    // Predicated region
    $region38: #{bert_embedding_layer_forward.1} parent=1 // pred_check
      _
    $region39: #{bert_embedding_layer_forward.1} parent=1 // pred_check_branch
      %42 = sbr.rel (0) target = $region41
    $region40: #{bert_embedding_layer_forward.1} parent=1 // pred_region
      _
    $region41: #{bert_embedding_layer_forward.1} parent=1 // pred_fallthru
      _
    // Predicated region
    $region42: #{bert_embedding_layer_forward.1} parent=1 // pred_check
      _
    $region43: #{bert_embedding_layer_forward.1} parent=1 // pred_check_branch
      %44 = sbr.rel (0) target = $region45
    $region44: #{bert_embedding_layer_forward.1} parent=1 // pred_region
      _
    $region45: #{bert_embedding_layer_forward.1} parent=1 // pred_fallthru
      _
    // Predicated region
    $region46: #{bert_embedding_layer_forward.1} parent=1 // pred_check
      _
    $region47: #{bert_embedding_layer_forward.1} parent=1 // pred_check_branch
      %46 = sbr.rel (0) target = $region49
    $region48: #{bert_embedding_layer_forward.1} parent=1 // pred_region
      _
    $region49: #{bert_embedding_layer_forward.1} parent=1 // pred_fallthru
      _
    // Predicated region
    $region50: #{bert_embedding_layer_forward.1} parent=1 // pred_check
      _
    $region51: #{bert_embedding_layer_forward.1} parent=1 // pred_check_branch
      %48 = sbr.rel (0) target = $region53
    $region52: #{bert_embedding_layer_forward.1} parent=1 // pred_region
      _
    $region53: #{bert_embedding_layer_forward.1} parent=1 // pred_fallthru
      _
    // Predicated region
    $region54: #{bert_embedding_layer_forward.1} parent=1 // pred_check
      _
    $region55: #{bert_embedding_layer_forward.1} parent=1 // pred_check_branch
      %50 = sbr.rel (0) target = $region57
    $region56: #{bert_embedding_layer_forward.1} parent=1 // pred_region
      _
    $region57: #{bert_embedding_layer_forward.1} parent=1 // pred_fallthru
      _
    // Predicated region
    $region58: #{bert_embedding_layer_forward.1} parent=1 // pred_check
      _
    $region59: #{bert_embedding_layer_forward.1} parent=1 // pred_check_branch
      %52 = sbr.rel (0) target = $region61
    $region60: #{bert_embedding_layer_forward.1} parent=1 // pred_region
      _
    $region61: #{bert_embedding_layer_forward.1} parent=1 // pred_fallthru
      _
    // Predicated region
    $region62: #{bert_embedding_layer_forward.1} parent=1 // pred_check
      _
    $region63: #{bert_embedding_layer_forward.1} parent=1 // pred_check_branch
      %54 = sbr.rel (0) target = $region65
    $region64: #{bert_embedding_layer_forward.1} parent=1 // pred_region
      _
    $region65: #{bert_embedding_layer_forward.1} parent=1 // pred_fallthru
      _
    // Predicated region
    $region66: #{bert_embedding_layer_forward.1} parent=1 // pred_check
      _
    $region67: #{bert_embedding_layer_forward.1} parent=1 // pred_check_branch
      %56 = sbr.rel (0) target = $region69
    $region68: #{bert_embedding_layer_forward.1} parent=1 // pred_region
      _
    $region69: #{bert_embedding_layer_forward.1} parent=1 // pred_fallthru
      _
    %v58 = vlaneseq
    %v59 = vand.u32 %v58, 127
    %v60 = vld [vmem:[%s0] sm:$0xff]
    %v61 = vld [vmem:[%s0 + $0x8] sm:$0xff]
    %62 = vset.pattern.permute.xlu0 0
    %63 = vperm.xlu0 %62, %v60
    %v64 = vpop.permute.xlu0 %63
    %65 = vset.pattern.permute.xlu0 0
    %66 = vperm.xlu0 %65, %v61
    %v67 = vpop.permute.xlu0 %66
    %vm68 = vcmp.eq.s32.totalorder %v64, %v59
    %vm69 = vcmp.eq.s32.totalorder %v67, %v59
    %v70 = vsel %vm68, 1, 0
    %v71 = vsel %vm69, 1, 0
    %v72 = vcvt.s32.f32 %v70
    %v73 = vcvt.s32.f32 %v71
    %v74 = vpack.c.bf16 %v73, %v72
    %v75 = vld [vmem:[%s1] sm:$0xf]
    %v76 = vld [vmem:[%s1 + $0x4] sm:$0xf]
    %v77 = vld [vmem:[%s1 + $0x8] sm:$0xf]
    %v78 = vld [vmem:[%s1 + $0xc] sm:$0xf]
    %v79 = vld [vmem:[%s1 + $0x10] sm:$0xf]
    %v80 = vld [vmem:[%s1 + $0x14] sm:$0xf]
    %v81 = vld [vmem:[%s1 + $0x18] sm:$0xf]
    %v82 = vld [vmem:[%s1 + $0x1c] sm:$0xf]
    %v83 = vld [vmem:[%s1 + $0x20] sm:$0xf]
    %v84 = vld [vmem:[%s1 + $0x24] sm:$0xf]
    %v85 = vld [vmem:[%s1 + $0x28] sm:$0xf]
    %v86 = vld [vmem:[%s1 + $0x2c] sm:$0xf]
    %v87 = vld [vmem:[%s1 + $0x30] sm:$0xf]
    %v88 = vld [vmem:[%s1 + $0x34] sm:$0xf]
    %v89 = vld [vmem:[%s1 + $0x38] sm:$0xf]
    %v90 = vld [vmem:[%s1 + $0x3c] sm:$0xf]
    %v91 = vld [vmem:[%s2] sm:$0xff]
    %v92 = vld [vmem:[%s2 + $0x8] sm:$0xff]
    %v109 = vunpack.c.l.b16 %v75
    %v110 = vunpack.c.l.b16 %v76
    %v111 = vunpack.c.l.b16 %v77
    %v112 = vunpack.c.l.b16 %v78
    %v113 = vunpack.c.l.b16 %v79
    %v114 = vunpack.c.l.b16 %v80
    %v115 = vunpack.c.l.b16 %v81
    %v116 = vunpack.c.l.b16 %v82
    %v117 = vunpack.c.l.b16 %v83
    %v118 = vunpack.c.l.b16 %v84
    %v119 = vunpack.c.l.b16 %v85
    %v120 = vunpack.c.l.b16 %v86
    %v121 = vunpack.c.l.b16 %v87
    %v122 = vunpack.c.l.b16 %v88
    %v123 = vunpack.c.l.b16 %v89
    %v124 = vunpack.c.l.b16 %v90
    %v125 = vpack.c.b16 %v110, %v109
    %v126 = vpack.c.b16 %v112, %v111
    %v127 = vpack.c.b16 %v114, %v113
    %v128 = vpack.c.b16 %v116, %v115
    %v129 = vpack.c.b16 %v118, %v117
    %v130 = vpack.c.b16 %v120, %v119
    %v131 = vpack.c.b16 %v122, %v121
    %v132 = vpack.c.b16 %v124, %v123
    %141 = vmatpush.bf16.msra.mxu0 %v132
    %142 = vmatpush.bf16.msra.mxu0 %v131
    %143 = vmatpush.bf16.msra.mxu0 %v130
    %144 = vmatpush.bf16.msra.mxu0 %v129
    %145 = vmatpush.bf16.msra.mxu0 %v128
    %146 = vmatpush.bf16.msra.mxu0 %v127
    %147 = vmatpush.bf16.msra.mxu0 %v126
    %148 = vmatpush.bf16.msra.mxu0 %v125
    %149 = vmatmul.bf16.gmra.mxu0 %v74
    %v150 = vpop.f32.mrf.mxu0
    %v151 = vadd.f32 %v91, %v150
    %v152 = vpop.f32.mrf.mxu0
    %v153 = vadd.f32 %v92, %v152
    %154 = vdwg.mxu0
    %v155 = vld [vmem:[%s3] sm:$0x1]
    %v156 = vld [vmem:[%s4] sm:$0x1]
    %vm157 = vcmask 261120
    %v158 = vsel %vm157, %v151, 0.0
    %159 = vadd.xlane.f32.xlu0 %v158
    %v160 = vpop.xlane.xlu0 %159
    %v161 = vsel %vm157, %v153, 0.0
    %162 = vadd.xlane.f32.xlu0 %v161
    %v163 = vpop.xlane.xlu0 %162
    %v164 = vrcp.pop 32.0
    %v165 = vmul.f32 32.0, %v164
    %v166 = vsub.f32 1.0, %v165
    %v167 = vmul.f32 %v164, %v166
    %v168 = vadd.f32 %v164, %v167
    %vm169 = vweird.f32 %v164
    %v170 = vsel %vm169, %v164, %v168
    %v171 = vmul.f32 %v160, %v170
    %v172 = vmul.f32 %v163, %v170
    %v173 = vsub.f32 %v151, %v171
    %v174 = vsub.f32 %v153, %v172
    %v175 = vmul.f32 %v173, %v173
    %v176 = vmul.f32 %v174, %v174
    %v177 = vsel %vm157, %v175, 0.0
    %178 = vadd.xlane.f32.xlu0 %v177
    %v179 = vpop.xlane.xlu0 %178
    %v180 = vsel %vm157, %v176, 0.0
    %181 = vadd.xlane.f32.xlu0 %v180
    %v182 = vpop.xlane.xlu0 %181
    %v183 = vmul.f32 %v179, %v170
    %v184 = vmul.f32 %v182, %v170
    %v185 = vadd.f32 %v183, 1e-12
    %v186 = vadd.f32 %v184, 1e-12
    %v187 = vrsqrt.pop %v185
    %v188 = vmul.f32 %v187, %v185
    %v189 = vmul.f32 %v188, %v187
    %v190 = vmul.f32 0.5, %v189
    %v191 = vsub.f32 1.5, %v190
    %v192 = vmul.f32 %v187, %v191
    %vm193 = vweird.f32 %v185
    %vm194 = vweird.f32 %v187
    %vm195 = vmor %vm193, %vm194
    %v196 = vsel %vm195, %v187, %v192
    %v197 = vrsqrt.pop %v186
    %v198 = vmul.f32 %v197, %v186
    %v199 = vmul.f32 %v198, %v197
    %v200 = vmul.f32 0.5, %v199
    %v201 = vsub.f32 1.5, %v200
    %v202 = vmul.f32 %v197, %v201
    %vm203 = vweird.f32 %v186
    %vm204 = vweird.f32 %v197
    %vm205 = vmor %vm203, %vm204
    %v206 = vsel %vm205, %v197, %v202
    %v207 = vmul.f32 %v173, %v196
    %v208 = vmul.f32 %v174, %v206
    %v210 = vperm.slane %v155, 0
    %v212 = vmul.f32 %v207, %v210
    %v213 = vmul.f32 %v208, %v210
    %v215 = vperm.slane %v156, 0
    %v217 = vadd.f32 %v212, %v215
    %v218 = vadd.f32 %v213, %v215
    %v219 = vpack.c.bf16 %v218, %v217
    %v220 = vld [vmem:[%s5] sm:$0xf]
    %v221 = vld [vmem:[%s5 + $0x4] sm:$0xf]
    %v222 = vld [vmem:[%s5 + $0x8] sm:$0xf]
    %v223 = vld [vmem:[%s5 + $0xc] sm:$0xf]
    %v224 = vld [vmem:[%s6] sm:$0x1]
    %v226 = vperm.slane %v224, 0
    %v232 = vunpack.c.l.b16 %v220
    %v233 = vunpack.c.l.b16 %v221
    %v234 = vunpack.c.l.b16 %v222
    %v235 = vunpack.c.l.b16 %v223
    %v236 = vpack.c.b16 %v233, %v232
    %v237 = vpack.c.b16 %v235, %v234
    %v241 = vsel %vm157, %v219, 0
    %243 = vmatpush.bf16.msra.mxu0 0
    %244 = vmatpush.bf16.msra.mxu0 0
    %245 = vmatpush.bf16.msra.mxu0 0
    %246 = vmatpush.bf16.msra.mxu0 0
    %247 = vmatpush.bf16.msra.mxu0 0
    %248 = vmatpush.bf16.msra.mxu0 0
    %249 = vmatpush.bf16.msra.mxu0 %v237
    %250 = vmatpush.bf16.msra.mxu0 %v236
    %251 = vmatmul.bf16.gmra.mxu0 %v241
    %v252 = vpop.f32.mrf.mxu0
    %v253 = vadd.f32 %v226, %v252
    %v254 = vpop.f32.mrf.mxu0
    %v255 = vadd.f32 %v226, %v254
    %256 = vdwg.mxu0
    %v257 = vpack.c.bf16 %v253, %v253
    %259 = vrot.lane.b32.xlu0 %v257, 96
    %v260 = vpop.permute.xlu0 %259
    %vm261 = vcmask 130048
    %v263 = vsel %vm261, %v257, 0
    %v266 = vsel %vm261, %v260, 0
    %268 = vmatpush.bf16.xpose.msra.mxu0 0
    %269 = vmatpush.bf16.xpose.msra.mxu0 0
    %270 = vmatpush.bf16.xpose.msra.mxu0 0
    %271 = vmatpush.bf16.xpose.msra.mxu0 0
    %272 = vmatpush.bf16.xpose.msra.mxu0 0
    %273 = vmatpush.bf16.xpose.msra.mxu0 0
    %274 = vmatpush.bf16.xpose.msra.mxu0 0
    %275 = vmatpush.bf16.xpose.msra.mxu0 %v266
    %276 = vmatmul.bf16.gmra.mxu0 %v263
    %v277 = vpop.f32.mrf.mxu0
    %v278 = vadd.f32 0.0, %v277
    %v279 = vpop.f32.mrf.mxu0
    %280 = vdwg.mxu0
    %vm281 = vcmask 64512
    %v282 = vsel %vm281, %v278, -inf
    %283 = vmax.xlane.f32.xlu0 %v282
    %v284 = vpop.xlane.xlu0 %283
    %v285 = vsub.f32 %v278, %v284
    %v286 = vmul.f32 %v285, 1.442695
    %v287 = vpow.pop %v286
    %v288 = vsel %vm281, %v287, 0.0
    %289 = vadd.xlane.f32.xlu0 %v288
    %v290 = vpop.xlane.xlu0 %289
    %v291 = vrcp.pop %v290
    %v292 = vmul.f32 %v287, %v291
    %v293 = vpack.c.bf16 %v292, %v292
    %294 = vrot.lane.b32.xlu0 %v257, 64
    %v295 = vpop.permute.xlu0 %294
    %v297 = vsel %vm281, %v293, 0
    %vm299 = vcmask 1043456
    %v301 = vsel %vm299, %v295, 0
    %303 = vmatpush.bf16.msra.mxu0 0
    %304 = vmatpush.bf16.msra.mxu0 0
    %305 = vmatpush.bf16.msra.mxu0 0
    %306 = vmatpush.bf16.msra.mxu0 0
    %307 = vmatpush.bf16.msra.mxu0 0
    %308 = vmatpush.bf16.msra.mxu0 0
    %309 = vmatpush.bf16.msra.mxu0 0
    %310 = vmatpush.bf16.msra.mxu0 %v301
    %311 = vmatmul.bf16.gmra.mxu0 %v297
    %v312 = vpop.f32.mrf.mxu0
    %v313 = vadd.f32 0.0, %v312
    %v314 = vpop.f32.mrf.mxu0
    %315 = vdwg.mxu0
    %v316 = vld [vmem:[%s7] sm:$0xf]
    %v317 = vld [vmem:[%s7 + $0x4] sm:$0xf]
    %v318 = vpack.c.bf16 %v313, %v313
    %319 = vrot.lane.b32.xlu0 %v257, 112
    %v320 = vpop.permute.xlu0 %319
    %321 = vrot.lane.b32.xlu0 %v257, 80
    %v322 = vpop.permute.xlu0 %321
    %v324 = vsel %vm261, %v320, 0
    %v327 = vsel %vm261, %v322, 0
    %329 = vmatpush.bf16.xpose.msra.mxu0 0
    %330 = vmatpush.bf16.xpose.msra.mxu0 0
    %331 = vmatpush.bf16.xpose.msra.mxu0 0
    %332 = vmatpush.bf16.xpose.msra.mxu0 0
    %333 = vmatpush.bf16.xpose.msra.mxu0 0
    %334 = vmatpush.bf16.xpose.msra.mxu0 0
    %335 = vmatpush.bf16.xpose.msra.mxu0 0
    %336 = vmatpush.bf16.xpose.msra.mxu0 %v327
    %337 = vmatmul.bf16.gmra.mxu0 %v324
    %v338 = vpop.f32.mrf.mxu0
    %v339 = vadd.f32 0.0, %v338
    %v340 = vpop.f32.mrf.mxu0
    %341 = vdwg.mxu0
    %v342 = vsel %vm281, %v339, -inf
    %343 = vmax.xlane.f32.xlu0 %v342
    %v344 = vpop.xlane.xlu0 %343
    %v345 = vsub.f32 %v339, %v344
    %v346 = vmul.f32 %v345, 1.442695
    %v347 = vpow.pop %v346
    %v348 = vsel %vm281, %v347, 0.0
    %349 = vadd.xlane.f32.xlu0 %v348
    %v350 = vpop.xlane.xlu0 %349
    %v351 = vrcp.pop %v350
    %v352 = vmul.f32 %v347, %v351
    %v353 = vpack.c.bf16 %v352, %v352
    %354 = vrot.lane.b32.xlu0 %v257, 48
    %v355 = vpop.permute.xlu0 %354
    %v357 = vsel %vm281, %v353, 0
    %v360 = vsel %vm299, %v355, 0
    %362 = vmatpush.bf16.msra.mxu0 0
    %363 = vmatpush.bf16.msra.mxu0 0
    %364 = vmatpush.bf16.msra.mxu0 0
    %365 = vmatpush.bf16.msra.mxu0 0
    %366 = vmatpush.bf16.msra.mxu0 0
    %367 = vmatpush.bf16.msra.mxu0 0
    %368 = vmatpush.bf16.msra.mxu0 0
    %369 = vmatpush.bf16.msra.mxu0 %v360
    %370 = vmatmul.bf16.gmra.mxu0 %v357
    %v371 = vpop.f32.mrf.mxu0
    %v372 = vadd.f32 0.0, %v371
    %v373 = vpop.f32.mrf.mxu0
    %374 = vdwg.mxu0
    %v375 = vld [vmem:[%s7 + $0x8] sm:$0xf]
    %v376 = vld [vmem:[%s7 + $0xc] sm:$0xf]
    %v377 = vpack.c.bf16 %v372, %v372
    %v380 = vunpack.c.l.b16 %v375
    %v381 = vunpack.c.l.b16 %v376
    %v382 = vpack.c.b16 %v381, %v380
    %v385 = vsel %vm261, %v377, 0
    %387 = vmatpush.bf16.msra.mxu0 0
    %388 = vmatpush.bf16.msra.mxu0 0
    %389 = vmatpush.bf16.msra.mxu0 0
    %390 = vmatpush.bf16.msra.mxu0 0
    %391 = vmatpush.bf16.msra.mxu0 0
    %392 = vmatpush.bf16.msra.mxu0 0
    %393 = vmatpush.bf16.msra.mxu0 0
    %394 = vmatpush.bf16.msra.mxu0 %v382
    %395 = vmatmul.bf16.gmra.mxu0 %v385
    %v396 = vpop.f32.mrf.mxu0
    %v397 = vadd.f32 0.0, %v396
    %v398 = vpop.f32.mrf.mxu0
    %399 = vdwg.mxu0
    %v402 = vunpack.c.l.b16 %v316
    %v403 = vunpack.c.l.b16 %v317
    %v404 = vpack.c.b16 %v403, %v402
    %v407 = vsel %vm261, %v318, 0
    %409 = vmatpush.bf16.msra.mxu0 0
    %410 = vmatpush.bf16.msra.mxu0 0
    %411 = vmatpush.bf16.msra.mxu0 0
    %412 = vmatpush.bf16.msra.mxu0 0
    %413 = vmatpush.bf16.msra.mxu0 0
    %414 = vmatpush.bf16.msra.mxu0 0
    %415 = vmatpush.bf16.msra.mxu0 0
    %416 = vmatpush.bf16.msra.mxu0 %v404
    %417 = vmatmul.bf16.gmra.mxu0 %v407
    %v418 = vpop.f32.mrf.mxu0
    %v419 = vadd.f32 %v397, %v418
    %v420 = vpop.f32.mrf.mxu0
    %421 = vdwg.mxu0
    %v422 = vpack.c.bf16 %v255, %v255
    %424 = vrot.lane.b32.xlu0 %v422, 96
    %v425 = vpop.permute.xlu0 %424
    %v427 = vsel %vm261, %v422, 0
    %v430 = vsel %vm261, %v425, 0
    %432 = vmatpush.bf16.xpose.msra.mxu0 0
    %433 = vmatpush.bf16.xpose.msra.mxu0 0
    %434 = vmatpush.bf16.xpose.msra.mxu0 0
    %435 = vmatpush.bf16.xpose.msra.mxu0 0
    %436 = vmatpush.bf16.xpose.msra.mxu0 0
    %437 = vmatpush.bf16.xpose.msra.mxu0 0
    %438 = vmatpush.bf16.xpose.msra.mxu0 0
    %439 = vmatpush.bf16.xpose.msra.mxu0 %v430
    %440 = vmatmul.bf16.gmra.mxu0 %v427
    %v441 = vpop.f32.mrf.mxu0
    %v442 = vadd.f32 0.0, %v441
    %v443 = vpop.f32.mrf.mxu0
    %444 = vdwg.mxu0
    %v445 = vsel %vm281, %v442, -inf
    %446 = vmax.xlane.f32.xlu0 %v445
    %v447 = vpop.xlane.xlu0 %446
    %v448 = vsub.f32 %v442, %v447
    %v449 = vmul.f32 %v448, 1.442695
    %v450 = vpow.pop %v449
    %v451 = vsel %vm281, %v450, 0.0
    %452 = vadd.xlane.f32.xlu0 %v451
    %v453 = vpop.xlane.xlu0 %452
    %v454 = vrcp.pop %v453
    %v455 = vmul.f32 %v450, %v454
    %v456 = vpack.c.bf16 %v455, %v455
    %457 = vrot.lane.b32.xlu0 %v422, 64
    %v458 = vpop.permute.xlu0 %457
    %v460 = vsel %vm281, %v456, 0
    %v463 = vsel %vm299, %v458, 0
    %465 = vmatpush.bf16.msra.mxu0 0
    %466 = vmatpush.bf16.msra.mxu0 0
    %467 = vmatpush.bf16.msra.mxu0 0
    %468 = vmatpush.bf16.msra.mxu0 0
    %469 = vmatpush.bf16.msra.mxu0 0
    %470 = vmatpush.bf16.msra.mxu0 0
    %471 = vmatpush.bf16.msra.mxu0 0
    %472 = vmatpush.bf16.msra.mxu0 %v463
    %473 = vmatmul.bf16.gmra.mxu0 %v460
    %v474 = vpop.f32.mrf.mxu0
    %v475 = vadd.f32 0.0, %v474
    %v476 = vpop.f32.mrf.mxu0
    %477 = vdwg.mxu0
    %v478 = vpack.c.bf16 %v475, %v475
    %479 = vrot.lane.b32.xlu0 %v422, 112
    %v480 = vpop.permute.xlu0 %479
    %481 = vrot.lane.b32.xlu0 %v422, 80
    %v482 = vpop.permute.xlu0 %481
    %v484 = vsel %vm261, %v480, 0
    %v487 = vsel %vm261, %v482, 0
    %489 = vmatpush.bf16.xpose.msra.mxu0 0
    %490 = vmatpush.bf16.xpose.msra.mxu0 0
    %491 = vmatpush.bf16.xpose.msra.mxu0 0
    %492 = vmatpush.bf16.xpose.msra.mxu0 0
    %493 = vmatpush.bf16.xpose.msra.mxu0 0
    %494 = vmatpush.bf16.xpose.msra.mxu0 0
    %495 = vmatpush.bf16.xpose.msra.mxu0 0
    %496 = vmatpush.bf16.xpose.msra.mxu0 %v487
    %497 = vmatmul.bf16.gmra.mxu0 %v484
    %v498 = vpop.f32.mrf.mxu0
    %v499 = vadd.f32 0.0, %v498
    %v500 = vpop.f32.mrf.mxu0
    %501 = vdwg.mxu0
    %v502 = vsel %vm281, %v499, -inf
    %503 = vmax.xlane.f32.xlu0 %v502
    %v504 = vpop.xlane.xlu0 %503
    %v505 = vsub.f32 %v499, %v504
    %v506 = vmul.f32 %v505, 1.442695
    %v507 = vpow.pop %v506
    %v508 = vsel %vm281, %v507, 0.0
    %509 = vadd.xlane.f32.xlu0 %v508
    %v510 = vpop.xlane.xlu0 %509
    %v511 = vrcp.pop %v510
    %v512 = vmul.f32 %v507, %v511
    %v513 = vpack.c.bf16 %v512, %v512
    %514 = vrot.lane.b32.xlu0 %v422, 48
    %v515 = vpop.permute.xlu0 %514
    %v517 = vsel %vm281, %v513, 0
    %v520 = vsel %vm299, %v515, 0
    %522 = vmatpush.bf16.msra.mxu0 0
    %523 = vmatpush.bf16.msra.mxu0 0
    %524 = vmatpush.bf16.msra.mxu0 0
    %525 = vmatpush.bf16.msra.mxu0 0
    %526 = vmatpush.bf16.msra.mxu0 0
    %527 = vmatpush.bf16.msra.mxu0 0
    %528 = vmatpush.bf16.msra.mxu0 0
    %529 = vmatpush.bf16.msra.mxu0 %v520
    %530 = vmatmul.bf16.gmra.mxu0 %v517
    %v531 = vpop.f32.mrf.mxu0
    %v532 = vadd.f32 0.0, %v531
    %v533 = vpop.f32.mrf.mxu0
    %534 = vdwg.mxu0
    %v535 = vpack.c.bf16 %v532, %v532
    %v537 = vsel %vm261, %v535, 0
    %539 = vmatpush.bf16.msra.mxu0 0
    %540 = vmatpush.bf16.msra.mxu0 0
    %541 = vmatpush.bf16.msra.mxu0 0
    %542 = vmatpush.bf16.msra.mxu0 0
    %543 = vmatpush.bf16.msra.mxu0 0
    %544 = vmatpush.bf16.msra.mxu0 0
    %545 = vmatpush.bf16.msra.mxu0 0
    %546 = vmatpush.bf16.msra.mxu0 %v382
    %547 = vmatmul.bf16.gmra.mxu0 %v537
    %v548 = vpop.f32.mrf.mxu0
    %v549 = vadd.f32 0.0, %v548
    %v550 = vpop.f32.mrf.mxu0
    %551 = vdwg.mxu0
    %v553 = vsel %vm261, %v478, 0
    %555 = vmatpush.bf16.msra.mxu0 0
    %556 = vmatpush.bf16.msra.mxu0 0
    %557 = vmatpush.bf16.msra.mxu0 0
    %558 = vmatpush.bf16.msra.mxu0 0
    %559 = vmatpush.bf16.msra.mxu0 0
    %560 = vmatpush.bf16.msra.mxu0 0
    %561 = vmatpush.bf16.msra.mxu0 0
    %562 = vmatpush.bf16.msra.mxu0 %v404
    %563 = vmatmul.bf16.gmra.mxu0 %v553
    %v564 = vpop.f32.mrf.mxu0
    %v565 = vadd.f32 %v549, %v564
    %v566 = vpop.f32.mrf.mxu0
    %567 = vdwg.mxu0
    %v568 = vld [vmem:[%s8] sm:$0x1]
    %v570 = vperm.slane %v568, 0
    %v572 = vadd.f32 %v419, %v570
    %v573 = vadd.f32 %v565, %v570
    %v574 = vadd.f32 %v572, %v217
    %v575 = vadd.f32 %v573, %v218
    %v576 = vld [vmem:[%s9] sm:$0x1]
    %v577 = vld [vmem:[%s10] sm:$0x1]
    %v578 = vsel %vm157, %v574, 0.0
    %579 = vadd.xlane.f32.xlu0 %v578
    %v580 = vpop.xlane.xlu0 %579
    %v581 = vsel %vm157, %v575, 0.0
    %582 = vadd.xlane.f32.xlu0 %v581
    %v583 = vpop.xlane.xlu0 %582
    %v584 = vmul.f32 %v580, %v170
    %v585 = vmul.f32 %v583, %v170
    %v586 = vsub.f32 %v574, %v584
    %v587 = vsub.f32 %v575, %v585
    %v588 = vmul.f32 %v586, %v586
    %v589 = vmul.f32 %v587, %v587
    %v590 = vsel %vm157, %v588, 0.0
    %591 = vadd.xlane.f32.xlu0 %v590
    %v592 = vpop.xlane.xlu0 %591
    %v593 = vsel %vm157, %v589, 0.0
    %594 = vadd.xlane.f32.xlu0 %v593
    %v595 = vpop.xlane.xlu0 %594
    %v596 = vmul.f32 %v592, %v170
    %v597 = vmul.f32 %v595, %v170
    %v598 = vadd.f32 %v596, 1e-12
    %v599 = vadd.f32 %v597, 1e-12
    %v600 = vrsqrt.pop %v598
    %v601 = vmul.f32 %v600, %v598
    %v602 = vmul.f32 %v601, %v600
    %v603 = vmul.f32 0.5, %v602
    %v604 = vsub.f32 1.5, %v603
    %v605 = vmul.f32 %v600, %v604
    %vm606 = vweird.f32 %v598
    %vm607 = vweird.f32 %v600
    %vm608 = vmor %vm606, %vm607
    %v609 = vsel %vm608, %v600, %v605
    %v610 = vrsqrt.pop %v599
    %v611 = vmul.f32 %v610, %v599
    %v612 = vmul.f32 %v611, %v610
    %v613 = vmul.f32 0.5, %v612
    %v614 = vsub.f32 1.5, %v613
    %v615 = vmul.f32 %v610, %v614
    %vm616 = vweird.f32 %v599
    %vm617 = vweird.f32 %v610
    %vm618 = vmor %vm616, %vm617
    %v619 = vsel %vm618, %v610, %v615
    %v620 = vmul.f32 %v586, %v609
    %v621 = vmul.f32 %v587, %v619
    %v623 = vperm.slane %v576, 0
    %v625 = vmul.f32 %v620, %v623
    %v626 = vmul.f32 %v621, %v623
    %v628 = vperm.slane %v577, 0
    %v630 = vadd.f32 %v625, %v628
    %v631 = vadd.f32 %v626, %v628
    %v632 = vpack.c.bf16 %v631, %v630
    %v633 = vld [vmem:[%s11] sm:$0xf]
    %v634 = vld [vmem:[%s11 + $0x4] sm:$0xf]
    %v635 = vld [vmem:[%s11 + $0x8] sm:$0xf]
    %v636 = vld [vmem:[%s11 + $0xc] sm:$0xf]
    %v637 = vld [vmem:[%s12] sm:$0x1]
    %v639 = vperm.slane %v637, 0
    %v645 = vunpack.c.l.b16 %v633
    %v646 = vunpack.c.l.b16 %v634
    %v647 = vunpack.c.l.b16 %v635
    %v648 = vunpack.c.l.b16 %v636
    %v649 = vpack.c.b16 %v646, %v645
    %v650 = vpack.c.b16 %v648, %v647
    %v654 = vsel %vm157, %v632, 0
    %656 = vmatpush.bf16.msra.mxu0 0
    %657 = vmatpush.bf16.msra.mxu0 0
    %658 = vmatpush.bf16.msra.mxu0 0
    %659 = vmatpush.bf16.msra.mxu0 0
    %660 = vmatpush.bf16.msra.mxu0 0
    %661 = vmatpush.bf16.msra.mxu0 0
    %662 = vmatpush.bf16.msra.mxu0 %v650
    %663 = vmatpush.bf16.msra.mxu0 %v649
    %664 = vmatmul.bf16.gmra.mxu0 %v654
    %v665 = vpop.f32.mrf.mxu0
    %v666 = vadd.f32 %v639, %v665
    %v667 = vpop.f32.mrf.mxu0
    %v668 = vadd.f32 %v639, %v667
    %669 = vdwg.mxu0
    %v670 = vmul.f32 %v666, 0.5
    %v671 = vmul.f32 %v668, 0.5
    %v672 = vmul.f32 %v666, 0.044715
    %v673 = vmul.f32 %v668, 0.044715
    %v674 = vmul.f32 %v672, %v666
    %v675 = vmul.f32 %v673, %v668
    %v676 = vmul.f32 %v674, %v666
    %v677 = vmul.f32 %v675, %v668
    %v678 = vadd.f32 %v666, %v676
    %v679 = vadd.f32 %v668, %v677
    %v680 = vmul.f32 %v678, 0.7978846
    %v681 = vmul.f32 %v679, 0.7978846
    %v682 = vtanh.pop %v680
    %v683 = vtanh.pop %v681
    %v684 = vadd.f32 %v682, 1.0
    %v685 = vadd.f32 %v683, 1.0
    %v686 = vmul.f32 %v670, %v684
    %v687 = vmul.f32 %v671, %v685
    %v688 = vpack.c.bf16 %v687, %v686
    %v689 = vld [vmem:[%s13] sm:$0xf]
    %v690 = vld [vmem:[%s13 + $0x4] sm:$0xf]
    %v691 = vld [vmem:[%s13 + $0x8] sm:$0xf]
    %v692 = vld [vmem:[%s13 + $0xc] sm:$0xf]
    %v693 = vld [vmem:[%s13 + $0x10] sm:$0xf]
    %v694 = vld [vmem:[%s13 + $0x14] sm:$0xf]
    %v695 = vld [vmem:[%s13 + $0x18] sm:$0xf]
    %v696 = vld [vmem:[%s13 + $0x1c] sm:$0xf]
    %v697 = vld [vmem:[%s14] sm:$0x1]
    %v699 = vperm.slane %v697, 0
    %v709 = vunpack.c.l.b16 %v689
    %v710 = vunpack.c.l.b16 %v690
    %v711 = vunpack.c.l.b16 %v691
    %v712 = vunpack.c.l.b16 %v692
    %v713 = vunpack.c.l.b16 %v693
    %v714 = vunpack.c.l.b16 %v694
    %v715 = vunpack.c.l.b16 %v695
    %v716 = vunpack.c.l.b16 %v696
    %v717 = vpack.c.b16 %v710, %v709
    %v718 = vpack.c.b16 %v712, %v711
    %v719 = vpack.c.b16 %v714, %v713
    %v720 = vpack.c.b16 %v716, %v715
    %vm725 = vcmask 523264
    %v727 = vsel %vm725, %v688, 0
    %729 = vmatpush.bf16.msra.mxu0 0
    %730 = vmatpush.bf16.msra.mxu0 0
    %731 = vmatpush.bf16.msra.mxu0 0
    %732 = vmatpush.bf16.msra.mxu0 0
    %733 = vmatpush.bf16.msra.mxu0 %v720
    %734 = vmatpush.bf16.msra.mxu0 %v719
    %735 = vmatpush.bf16.msra.mxu0 %v718
    %736 = vmatpush.bf16.msra.mxu0 %v717
    %737 = vmatmul.bf16.gmra.mxu0 %v727
    %v738 = vpop.f32.mrf.mxu0
    %v739 = vadd.f32 %v699, %v738
    %v740 = vpop.f32.mrf.mxu0
    %v741 = vadd.f32 %v699, %v740
    %742 = vdwg.mxu0
    %v743 = vadd.f32 %v739, %v630
    %v744 = vadd.f32 %v741, %v631
    %v745 = vld [vmem:[%s15] sm:$0x1]
    %v746 = vld [vmem:[%s16] sm:$0x1]
    %v747 = vsel %vm157, %v743, 0.0
    %748 = vadd.xlane.f32.xlu0 %v747
    %v749 = vpop.xlane.xlu0 %748
    %v750 = vsel %vm157, %v744, 0.0
    %751 = vadd.xlane.f32.xlu0 %v750
    %v752 = vpop.xlane.xlu0 %751
    %v753 = vmul.f32 %v749, %v170
    %v754 = vmul.f32 %v752, %v170
    %v755 = vsub.f32 %v743, %v753
    %v756 = vsub.f32 %v744, %v754
    %v757 = vmul.f32 %v755, %v755
    %v758 = vmul.f32 %v756, %v756
    %v759 = vsel %vm157, %v757, 0.0
    %760 = vadd.xlane.f32.xlu0 %v759
    %v761 = vpop.xlane.xlu0 %760
    %v762 = vsel %vm157, %v758, 0.0
    %763 = vadd.xlane.f32.xlu0 %v762
    %v764 = vpop.xlane.xlu0 %763
    %v765 = vmul.f32 %v761, %v170
    %v766 = vmul.f32 %v764, %v170
    %v767 = vadd.f32 %v765, 1e-12
    %v768 = vadd.f32 %v766, 1e-12
    %v769 = vrsqrt.pop %v767
    %v770 = vmul.f32 %v769, %v767
    %v771 = vmul.f32 %v770, %v769
    %v772 = vmul.f32 0.5, %v771
    %v773 = vsub.f32 1.5, %v772
    %v774 = vmul.f32 %v769, %v773
    %vm775 = vweird.f32 %v767
    %vm776 = vweird.f32 %v769
    %vm777 = vmor %vm775, %vm776
    %v778 = vsel %vm777, %v769, %v774
    %v779 = vrsqrt.pop %v768
    %v780 = vmul.f32 %v779, %v768
    %v781 = vmul.f32 %v780, %v779
    %v782 = vmul.f32 0.5, %v781
    %v783 = vsub.f32 1.5, %v782
    %v784 = vmul.f32 %v779, %v783
    %vm785 = vweird.f32 %v768
    %vm786 = vweird.f32 %v779
    %vm787 = vmor %vm785, %vm786
    %v788 = vsel %vm787, %v779, %v784
    %v789 = vmul.f32 %v755, %v778
    %v790 = vmul.f32 %v756, %v788
    %v792 = vperm.slane %v745, 0
    %v794 = vmul.f32 %v789, %v792
    %v795 = vmul.f32 %v790, %v792
    %v797 = vperm.slane %v746, 0
    %v799 = vadd.f32 %v794, %v797
    %v800 = vadd.f32 %v795, %v797
    %v801 = vpack.c.bf16 %v800, %v799
    %s802 = scalar_lea.vmem %s5, 16
    %v803 = vld [vmem:[%s802] sm:$0xf]
    %v804 = vld [vmem:[%s802 + $0x4] sm:$0xf]
    %v805 = vld [vmem:[%s802 + $0x8] sm:$0xf]
    %v806 = vld [vmem:[%s802 + $0xc] sm:$0xf]
    %s807 = scalar_lea.vmem %s6, 1
    %v808 = vld [vmem:[%s807] sm:$0x1]
    %v810 = vperm.slane %v808, 0
    %v816 = vunpack.c.l.b16 %v803
    %v817 = vunpack.c.l.b16 %v804
    %v818 = vunpack.c.l.b16 %v805
    %v819 = vunpack.c.l.b16 %v806
    %v820 = vpack.c.b16 %v817, %v816
    %v821 = vpack.c.b16 %v819, %v818
    %v825 = vsel %vm157, %v801, 0
    %827 = vmatpush.bf16.msra.mxu0 0
    %828 = vmatpush.bf16.msra.mxu0 0
    %829 = vmatpush.bf16.msra.mxu0 0
    %830 = vmatpush.bf16.msra.mxu0 0
    %831 = vmatpush.bf16.msra.mxu0 0
    %832 = vmatpush.bf16.msra.mxu0 0
    %833 = vmatpush.bf16.msra.mxu0 %v821
    %834 = vmatpush.bf16.msra.mxu0 %v820
    %835 = vmatmul.bf16.gmra.mxu0 %v825
    %v836 = vpop.f32.mrf.mxu0
    %v837 = vadd.f32 %v810, %v836
    %v838 = vpop.f32.mrf.mxu0
    %v839 = vadd.f32 %v810, %v838
    %840 = vdwg.mxu0
    %v841 = vpack.c.bf16 %v837, %v837
    %843 = vrot.lane.b32.xlu0 %v841, 96
    %v844 = vpop.permute.xlu0 %843
    %v846 = vsel %vm261, %v841, 0
    %v849 = vsel %vm261, %v844, 0
    %851 = vmatpush.bf16.xpose.msra.mxu0 0
    %852 = vmatpush.bf16.xpose.msra.mxu0 0
    %853 = vmatpush.bf16.xpose.msra.mxu0 0
    %854 = vmatpush.bf16.xpose.msra.mxu0 0
    %855 = vmatpush.bf16.xpose.msra.mxu0 0
    %856 = vmatpush.bf16.xpose.msra.mxu0 0
    %857 = vmatpush.bf16.xpose.msra.mxu0 0
    %858 = vmatpush.bf16.xpose.msra.mxu0 %v849
    %859 = vmatmul.bf16.gmra.mxu0 %v846
    %v860 = vpop.f32.mrf.mxu0
    %v861 = vadd.f32 0.0, %v860
    %v862 = vpop.f32.mrf.mxu0
    %863 = vdwg.mxu0
    %v864 = vsel %vm281, %v861, -inf
    %865 = vmax.xlane.f32.xlu0 %v864
    %v866 = vpop.xlane.xlu0 %865
    %v867 = vsub.f32 %v861, %v866
    %v868 = vmul.f32 %v867, 1.442695
    %v869 = vpow.pop %v868
    %v870 = vsel %vm281, %v869, 0.0
    %871 = vadd.xlane.f32.xlu0 %v870
    %v872 = vpop.xlane.xlu0 %871
    %v873 = vrcp.pop %v872
    %v874 = vmul.f32 %v869, %v873
    %v875 = vpack.c.bf16 %v874, %v874
    %876 = vrot.lane.b32.xlu0 %v841, 64
    %v877 = vpop.permute.xlu0 %876
    %v879 = vsel %vm281, %v875, 0
    %v882 = vsel %vm299, %v877, 0
    %884 = vmatpush.bf16.msra.mxu0 0
    %885 = vmatpush.bf16.msra.mxu0 0
    %886 = vmatpush.bf16.msra.mxu0 0
    %887 = vmatpush.bf16.msra.mxu0 0
    %888 = vmatpush.bf16.msra.mxu0 0
    %889 = vmatpush.bf16.msra.mxu0 0
    %890 = vmatpush.bf16.msra.mxu0 0
    %891 = vmatpush.bf16.msra.mxu0 %v882
    %892 = vmatmul.bf16.gmra.mxu0 %v879
    %v893 = vpop.f32.mrf.mxu0
    %v894 = vadd.f32 0.0, %v893
    %v895 = vpop.f32.mrf.mxu0
    %896 = vdwg.mxu0
    %s897 = scalar_lea.vmem %s7, 16
    %v898 = vld [vmem:[%s897] sm:$0xf]
    %v899 = vld [vmem:[%s897 + $0x4] sm:$0xf]
    %v900 = vpack.c.bf16 %v894, %v894
    %901 = vrot.lane.b32.xlu0 %v841, 112
    %v902 = vpop.permute.xlu0 %901
    %903 = vrot.lane.b32.xlu0 %v841, 80
    %v904 = vpop.permute.xlu0 %903
    %v906 = vsel %vm261, %v902, 0
    %v909 = vsel %vm261, %v904, 0
    %911 = vmatpush.bf16.xpose.msra.mxu0 0
    %912 = vmatpush.bf16.xpose.msra.mxu0 0
    %913 = vmatpush.bf16.xpose.msra.mxu0 0
    %914 = vmatpush.bf16.xpose.msra.mxu0 0
    %915 = vmatpush.bf16.xpose.msra.mxu0 0
    %916 = vmatpush.bf16.xpose.msra.mxu0 0
    %917 = vmatpush.bf16.xpose.msra.mxu0 0
    %918 = vmatpush.bf16.xpose.msra.mxu0 %v909
    %919 = vmatmul.bf16.gmra.mxu0 %v906
    %v920 = vpop.f32.mrf.mxu0
    %v921 = vadd.f32 0.0, %v920
    %v922 = vpop.f32.mrf.mxu0
    %923 = vdwg.mxu0
    %v924 = vsel %vm281, %v921, -inf
    %925 = vmax.xlane.f32.xlu0 %v924
    %v926 = vpop.xlane.xlu0 %925
    %v927 = vsub.f32 %v921, %v926
    %v928 = vmul.f32 %v927, 1.442695
    %v929 = vpow.pop %v928
    %v930 = vsel %vm281, %v929, 0.0
    %931 = vadd.xlane.f32.xlu0 %v930
    %v932 = vpop.xlane.xlu0 %931
    %v933 = vrcp.pop %v932
    %v934 = vmul.f32 %v929, %v933
    %v935 = vpack.c.bf16 %v934, %v934
    %936 = vrot.lane.b32.xlu0 %v841, 48
    %v937 = vpop.permute.xlu0 %936
    %v939 = vsel %vm281, %v935, 0
    %v942 = vsel %vm299, %v937, 0
    %944 = vmatpush.bf16.msra.mxu0 0
    %945 = vmatpush.bf16.msra.mxu0 0
    %946 = vmatpush.bf16.msra.mxu0 0
    %947 = vmatpush.bf16.msra.mxu0 0
    %948 = vmatpush.bf16.msra.mxu0 0
    %949 = vmatpush.bf16.msra.mxu0 0
    %950 = vmatpush.bf16.msra.mxu0 0
    %951 = vmatpush.bf16.msra.mxu0 %v942
    %952 = vmatmul.bf16.gmra.mxu0 %v939
    %v953 = vpop.f32.mrf.mxu0
    %v954 = vadd.f32 0.0, %v953
    %v955 = vpop.f32.mrf.mxu0
    %956 = vdwg.mxu0
    %v957 = vld [vmem:[%s897 + $0x8] sm:$0xf]
    %v958 = vld [vmem:[%s897 + $0xc] sm:$0xf]
    %v959 = vpack.c.bf16 %v954, %v954
    %v962 = vunpack.c.l.b16 %v957
    %v963 = vunpack.c.l.b16 %v958
    %v964 = vpack.c.b16 %v963, %v962
    %v967 = vsel %vm261, %v959, 0
    %969 = vmatpush.bf16.msra.mxu0 0
    %970 = vmatpush.bf16.msra.mxu0 0
    %971 = vmatpush.bf16.msra.mxu0 0
    %972 = vmatpush.bf16.msra.mxu0 0
    %973 = vmatpush.bf16.msra.mxu0 0
    %974 = vmatpush.bf16.msra.mxu0 0
    %975 = vmatpush.bf16.msra.mxu0 0
    %976 = vmatpush.bf16.msra.mxu0 %v964
    %977 = vmatmul.bf16.gmra.mxu0 %v967
    %v978 = vpop.f32.mrf.mxu0
    %v979 = vadd.f32 0.0, %v978
    %v980 = vpop.f32.mrf.mxu0
    %981 = vdwg.mxu0
    %v984 = vunpack.c.l.b16 %v898
    %v985 = vunpack.c.l.b16 %v899
    %v986 = vpack.c.b16 %v985, %v984
    %v989 = vsel %vm261, %v900, 0
    %991 = vmatpush.bf16.msra.mxu0 0
    %992 = vmatpush.bf16.msra.mxu0 0
    %993 = vmatpush.bf16.msra.mxu0 0
    %994 = vmatpush.bf16.msra.mxu0 0
    %995 = vmatpush.bf16.msra.mxu0 0
    %996 = vmatpush.bf16.msra.mxu0 0
    %997 = vmatpush.bf16.msra.mxu0 0
    %998 = vmatpush.bf16.msra.mxu0 %v986
    %999 = vmatmul.bf16.gmra.mxu0 %v989
    %v1000 = vpop.f32.mrf.mxu0
    %v1001 = vadd.f32 %v979, %v1000
    %v1002 = vpop.f32.mrf.mxu0
    %1003 = vdwg.mxu0
    %v1004 = vpack.c.bf16 %v839, %v839
    %1006 = vrot.lane.b32.xlu0 %v1004, 96
    %v1007 = vpop.permute.xlu0 %1006
    %v1009 = vsel %vm261, %v1004, 0
    %v1012 = vsel %vm261, %v1007, 0
    %1014 = vmatpush.bf16.xpose.msra.mxu0 0
    %1015 = vmatpush.bf16.xpose.msra.mxu0 0
    %1016 = vmatpush.bf16.xpose.msra.mxu0 0
    %1017 = vmatpush.bf16.xpose.msra.mxu0 0
    %1018 = vmatpush.bf16.xpose.msra.mxu0 0
    %1019 = vmatpush.bf16.xpose.msra.mxu0 0
    %1020 = vmatpush.bf16.xpose.msra.mxu0 0
    %1021 = vmatpush.bf16.xpose.msra.mxu0 %v1012
    %1022 = vmatmul.bf16.gmra.mxu0 %v1009
    %v1023 = vpop.f32.mrf.mxu0
    %v1024 = vadd.f32 0.0, %v1023
    %v1025 = vpop.f32.mrf.mxu0
    %1026 = vdwg.mxu0
    %v1027 = vsel %vm281, %v1024, -inf
    %1028 = vmax.xlane.f32.xlu0 %v1027
    %v1029 = vpop.xlane.xlu0 %1028
    %v1030 = vsub.f32 %v1024, %v1029
    %v1031 = vmul.f32 %v1030, 1.442695
    %v1032 = vpow.pop %v1031
    %v1033 = vsel %vm281, %v1032, 0.0
    %1034 = vadd.xlane.f32.xlu0 %v1033
    %v1035 = vpop.xlane.xlu0 %1034
    %v1036 = vrcp.pop %v1035
    %v1037 = vmul.f32 %v1032, %v1036
    %v1038 = vpack.c.bf16 %v1037, %v1037
    %1039 = vrot.lane.b32.xlu0 %v1004, 64
    %v1040 = vpop.permute.xlu0 %1039
    %v1042 = vsel %vm281, %v1038, 0
    %v1045 = vsel %vm299, %v1040, 0
    %1047 = vmatpush.bf16.msra.mxu0 0
    %1048 = vmatpush.bf16.msra.mxu0 0
    %1049 = vmatpush.bf16.msra.mxu0 0
    %1050 = vmatpush.bf16.msra.mxu0 0
    %1051 = vmatpush.bf16.msra.mxu0 0
    %1052 = vmatpush.bf16.msra.mxu0 0
    %1053 = vmatpush.bf16.msra.mxu0 0
    %1054 = vmatpush.bf16.msra.mxu0 %v1045
    %1055 = vmatmul.bf16.gmra.mxu0 %v1042
    %v1056 = vpop.f32.mrf.mxu0
    %v1057 = vadd.f32 0.0, %v1056
    %v1058 = vpop.f32.mrf.mxu0
    %1059 = vdwg.mxu0
    %v1060 = vpack.c.bf16 %v1057, %v1057
    %1061 = vrot.lane.b32.xlu0 %v1004, 112
    %v1062 = vpop.permute.xlu0 %1061
    %1063 = vrot.lane.b32.xlu0 %v1004, 80
    %v1064 = vpop.permute.xlu0 %1063
    %v1066 = vsel %vm261, %v1062, 0
    %v1069 = vsel %vm261, %v1064, 0
    %1071 = vmatpush.bf16.xpose.msra.mxu0 0
    %1072 = vmatpush.bf16.xpose.msra.mxu0 0
    %1073 = vmatpush.bf16.xpose.msra.mxu0 0
    %1074 = vmatpush.bf16.xpose.msra.mxu0 0
    %1075 = vmatpush.bf16.xpose.msra.mxu0 0
    %1076 = vmatpush.bf16.xpose.msra.mxu0 0
    %1077 = vmatpush.bf16.xpose.msra.mxu0 0
    %1078 = vmatpush.bf16.xpose.msra.mxu0 %v1069
    %1079 = vmatmul.bf16.gmra.mxu0 %v1066
    %v1080 = vpop.f32.mrf.mxu0
    %v1081 = vadd.f32 0.0, %v1080
    %v1082 = vpop.f32.mrf.mxu0
    %1083 = vdwg.mxu0
    %v1084 = vsel %vm281, %v1081, -inf
    %1085 = vmax.xlane.f32.xlu0 %v1084
    %v1086 = vpop.xlane.xlu0 %1085
    %v1087 = vsub.f32 %v1081, %v1086
    %v1088 = vmul.f32 %v1087, 1.442695
    %v1089 = vpow.pop %v1088
    %v1090 = vsel %vm281, %v1089, 0.0
    %1091 = vadd.xlane.f32.xlu0 %v1090
    %v1092 = vpop.xlane.xlu0 %1091
    %v1093 = vrcp.pop %v1092
    %v1094 = vmul.f32 %v1089, %v1093
    %v1095 = vpack.c.bf16 %v1094, %v1094
    %1096 = vrot.lane.b32.xlu0 %v1004, 48
    %v1097 = vpop.permute.xlu0 %1096
    %v1099 = vsel %vm281, %v1095, 0
    %v1102 = vsel %vm299, %v1097, 0
    %1104 = vmatpush.bf16.msra.mxu0 0
    %1105 = vmatpush.bf16.msra.mxu0 0
    %1106 = vmatpush.bf16.msra.mxu0 0
    %1107 = vmatpush.bf16.msra.mxu0 0
    %1108 = vmatpush.bf16.msra.mxu0 0
    %1109 = vmatpush.bf16.msra.mxu0 0
    %1110 = vmatpush.bf16.msra.mxu0 0
    %1111 = vmatpush.bf16.msra.mxu0 %v1102
    %1112 = vmatmul.bf16.gmra.mxu0 %v1099
    %v1113 = vpop.f32.mrf.mxu0
    %v1114 = vadd.f32 0.0, %v1113
    %v1115 = vpop.f32.mrf.mxu0
    %1116 = vdwg.mxu0
    %v1117 = vpack.c.bf16 %v1114, %v1114
    %v1119 = vsel %vm261, %v1117, 0
    %1121 = vmatpush.bf16.msra.mxu0 0
    %1122 = vmatpush.bf16.msra.mxu0 0
    %1123 = vmatpush.bf16.msra.mxu0 0
    %1124 = vmatpush.bf16.msra.mxu0 0
    %1125 = vmatpush.bf16.msra.mxu0 0
    %1126 = vmatpush.bf16.msra.mxu0 0
    %1127 = vmatpush.bf16.msra.mxu0 0
    %1128 = vmatpush.bf16.msra.mxu0 %v964
    %1129 = vmatmul.bf16.gmra.mxu0 %v1119
    %v1130 = vpop.f32.mrf.mxu0
    %v1131 = vadd.f32 0.0, %v1130
    %v1132 = vpop.f32.mrf.mxu0
    %1133 = vdwg.mxu0
    %v1135 = vsel %vm261, %v1060, 0
    %1137 = vmatpush.bf16.msra.mxu0 0
    %1138 = vmatpush.bf16.msra.mxu0 0
    %1139 = vmatpush.bf16.msra.mxu0 0
    %1140 = vmatpush.bf16.msra.mxu0 0
    %1141 = vmatpush.bf16.msra.mxu0 0
    %1142 = vmatpush.bf16.msra.mxu0 0
    %1143 = vmatpush.bf16.msra.mxu0 0
    %1144 = vmatpush.bf16.msra.mxu0 %v986
    %1145 = vmatmul.bf16.gmra.mxu0 %v1135
    %v1146 = vpop.f32.mrf.mxu0
    %v1147 = vadd.f32 %v1131, %v1146
    %v1148 = vpop.f32.mrf.mxu0
    %1149 = vdwg.mxu0
    %s1150 = scalar_lea.vmem %s8, 1
    %v1151 = vld [vmem:[%s1150] sm:$0x1]
    %v1153 = vperm.slane %v1151, 0
    %v1155 = vadd.f32 %v1001, %v1153
    %v1156 = vadd.f32 %v1147, %v1153
    %v1157 = vadd.f32 %v1155, %v799
    %v1158 = vadd.f32 %v1156, %v800
    %s1159 = scalar_lea.vmem %s9, 1
    %v1160 = vld [vmem:[%s1159] sm:$0x1]
    %s1161 = scalar_lea.vmem %s10, 1
    %v1162 = vld [vmem:[%s1161] sm:$0x1]
    %v1163 = vsel %vm157, %v1157, 0.0
    %1164 = vadd.xlane.f32.xlu0 %v1163
    %v1165 = vpop.xlane.xlu0 %1164
    %v1166 = vsel %vm157, %v1158, 0.0
    %1167 = vadd.xlane.f32.xlu0 %v1166
    %v1168 = vpop.xlane.xlu0 %1167
    %v1169 = vmul.f32 %v1165, %v170
    %v1170 = vmul.f32 %v1168, %v170
    %v1171 = vsub.f32 %v1157, %v1169
    %v1172 = vsub.f32 %v1158, %v1170
    %v1173 = vmul.f32 %v1171, %v1171
    %v1174 = vmul.f32 %v1172, %v1172
    %v1175 = vsel %vm157, %v1173, 0.0
    %1176 = vadd.xlane.f32.xlu0 %v1175
    %v1177 = vpop.xlane.xlu0 %1176
    %v1178 = vsel %vm157, %v1174, 0.0
    %1179 = vadd.xlane.f32.xlu0 %v1178
    %v1180 = vpop.xlane.xlu0 %1179
    %v1181 = vmul.f32 %v1177, %v170
    %v1182 = vmul.f32 %v1180, %v170
    %v1183 = vadd.f32 %v1181, 1e-12
    %v1184 = vadd.f32 %v1182, 1e-12
    %v1185 = vrsqrt.pop %v1183
    %v1186 = vmul.f32 %v1185, %v1183
    %v1187 = vmul.f32 %v1186, %v1185
    %v1188 = vmul.f32 0.5, %v1187
    %v1189 = vsub.f32 1.5, %v1188
    %v1190 = vmul.f32 %v1185, %v1189
    %vm1191 = vweird.f32 %v1183
    %vm1192 = vweird.f32 %v1185
    %vm1193 = vmor %vm1191, %vm1192
    %v1194 = vsel %vm1193, %v1185, %v1190
    %v1195 = vrsqrt.pop %v1184
    %v1196 = vmul.f32 %v1195, %v1184
    %v1197 = vmul.f32 %v1196, %v1195
    %v1198 = vmul.f32 0.5, %v1197
    %v1199 = vsub.f32 1.5, %v1198
    %v1200 = vmul.f32 %v1195, %v1199
    %vm1201 = vweird.f32 %v1184
    %vm1202 = vweird.f32 %v1195
    %vm1203 = vmor %vm1201, %vm1202
    %v1204 = vsel %vm1203, %v1195, %v1200
    %v1205 = vmul.f32 %v1171, %v1194
    %v1206 = vmul.f32 %v1172, %v1204
    %v1208 = vperm.slane %v1160, 0
    %v1210 = vmul.f32 %v1205, %v1208
    %v1211 = vmul.f32 %v1206, %v1208
    %v1213 = vperm.slane %v1162, 0
    %v1215 = vadd.f32 %v1210, %v1213
    %v1216 = vadd.f32 %v1211, %v1213
    %v1217 = vpack.c.bf16 %v1216, %v1215
    %s1218 = scalar_lea.vmem %s11, 16
    %v1219 = vld [vmem:[%s1218] sm:$0xf]
    %v1220 = vld [vmem:[%s1218 + $0x4] sm:$0xf]
    %v1221 = vld [vmem:[%s1218 + $0x8] sm:$0xf]
    %v1222 = vld [vmem:[%s1218 + $0xc] sm:$0xf]
    %s1223 = scalar_lea.vmem %s12, 1
    %v1224 = vld [vmem:[%s1223] sm:$0x1]
    %v1226 = vperm.slane %v1224, 0
    %v1232 = vunpack.c.l.b16 %v1219
    %v1233 = vunpack.c.l.b16 %v1220
    %v1234 = vunpack.c.l.b16 %v1221
    %v1235 = vunpack.c.l.b16 %v1222
    %v1236 = vpack.c.b16 %v1233, %v1232
    %v1237 = vpack.c.b16 %v1235, %v1234
    %v1241 = vsel %vm157, %v1217, 0
    %1243 = vmatpush.bf16.msra.mxu0 0
    %1244 = vmatpush.bf16.msra.mxu0 0
    %1245 = vmatpush.bf16.msra.mxu0 0
    %1246 = vmatpush.bf16.msra.mxu0 0
    %1247 = vmatpush.bf16.msra.mxu0 0
    %1248 = vmatpush.bf16.msra.mxu0 0
    %1249 = vmatpush.bf16.msra.mxu0 %v1237
    %1250 = vmatpush.bf16.msra.mxu0 %v1236
    %1251 = vmatmul.bf16.gmra.mxu0 %v1241
    %v1252 = vpop.f32.mrf.mxu0
    %v1253 = vadd.f32 %v1226, %v1252
    %v1254 = vpop.f32.mrf.mxu0
    %v1255 = vadd.f32 %v1226, %v1254
    %1256 = vdwg.mxu0
    %v1257 = vmul.f32 %v1253, 0.5
    %v1258 = vmul.f32 %v1255, 0.5
    %v1259 = vmul.f32 %v1253, 0.044715
    %v1260 = vmul.f32 %v1255, 0.044715
    %v1261 = vmul.f32 %v1259, %v1253
    %v1262 = vmul.f32 %v1260, %v1255
    %v1263 = vmul.f32 %v1261, %v1253
    %v1264 = vmul.f32 %v1262, %v1255
    %v1265 = vadd.f32 %v1253, %v1263
    %v1266 = vadd.f32 %v1255, %v1264
    %v1267 = vmul.f32 %v1265, 0.7978846
    %v1268 = vmul.f32 %v1266, 0.7978846
    %v1269 = vtanh.pop %v1267
    %v1270 = vtanh.pop %v1268
    %v1271 = vadd.f32 %v1269, 1.0
    %v1272 = vadd.f32 %v1270, 1.0
    %v1273 = vmul.f32 %v1257, %v1271
    %v1274 = vmul.f32 %v1258, %v1272
    %v1275 = vpack.c.bf16 %v1274, %v1273
    %s1276 = scalar_lea.vmem %s13, 32
    %v1277 = vld [vmem:[%s1276] sm:$0xf]
    %v1278 = vld [vmem:[%s1276 + $0x4] sm:$0xf]
    %v1279 = vld [vmem:[%s1276 + $0x8] sm:$0xf]
    %v1280 = vld [vmem:[%s1276 + $0xc] sm:$0xf]
    %v1281 = vld [vmem:[%s1276 + $0x10] sm:$0xf]
    %v1282 = vld [vmem:[%s1276 + $0x14] sm:$0xf]
    %v1283 = vld [vmem:[%s1276 + $0x18] sm:$0xf]
    %v1284 = vld [vmem:[%s1276 + $0x1c] sm:$0xf]
    %s1285 = scalar_lea.vmem %s14, 1
    %v1286 = vld [vmem:[%s1285] sm:$0x1]
    %v1288 = vperm.slane %v1286, 0
    %v1298 = vunpack.c.l.b16 %v1277
    %v1299 = vunpack.c.l.b16 %v1278
    %v1300 = vunpack.c.l.b16 %v1279
    %v1301 = vunpack.c.l.b16 %v1280
    %v1302 = vunpack.c.l.b16 %v1281
    %v1303 = vunpack.c.l.b16 %v1282
    %v1304 = vunpack.c.l.b16 %v1283
    %v1305 = vunpack.c.l.b16 %v1284
    %v1306 = vpack.c.b16 %v1299, %v1298
    %v1307 = vpack.c.b16 %v1301, %v1300
    %v1308 = vpack.c.b16 %v1303, %v1302
    %v1309 = vpack.c.b16 %v1305, %v1304
    %v1315 = vsel %vm725, %v1275, 0
    %1317 = vmatpush.bf16.msra.mxu0 0
    %1318 = vmatpush.bf16.msra.mxu0 0
    %1319 = vmatpush.bf16.msra.mxu0 0
    %1320 = vmatpush.bf16.msra.mxu0 0
    %1321 = vmatpush.bf16.msra.mxu0 %v1309
    %1322 = vmatpush.bf16.msra.mxu0 %v1308
    %1323 = vmatpush.bf16.msra.mxu0 %v1307
    %1324 = vmatpush.bf16.msra.mxu0 %v1306
    %1325 = vmatmul.bf16.gmra.mxu0 %v1315
    %v1326 = vpop.f32.mrf.mxu0
    %v1327 = vadd.f32 %v1288, %v1326
    %v1328 = vpop.f32.mrf.mxu0
    %v1329 = vadd.f32 %v1288, %v1328
    %1330 = vdwg.mxu0
    %v1331 = vadd.f32 %v1327, %v1215
    %v1332 = vadd.f32 %v1329, %v1216
    %s1333 = scalar_lea.vmem %s15, 1
    %v1334 = vld [vmem:[%s1333] sm:$0x1]
    %s1335 = scalar_lea.vmem %s16, 1
    %v1336 = vld [vmem:[%s1335] sm:$0x1]
    %v1337 = vsel %vm157, %v1331, 0.0
    %1338 = vadd.xlane.f32.xlu0 %v1337
    %v1339 = vpop.xlane.xlu0 %1338
    %v1340 = vsel %vm157, %v1332, 0.0
    %1341 = vadd.xlane.f32.xlu0 %v1340
    %v1342 = vpop.xlane.xlu0 %1341
    %v1343 = vmul.f32 %v1339, %v170
    %v1344 = vmul.f32 %v1342, %v170
    %v1345 = vsub.f32 %v1331, %v1343
    %v1346 = vsub.f32 %v1332, %v1344
    %v1347 = vmul.f32 %v1345, %v1345
    %v1348 = vmul.f32 %v1346, %v1346
    %v1349 = vsel %vm157, %v1347, 0.0
    %1350 = vadd.xlane.f32.xlu0 %v1349
    %v1351 = vpop.xlane.xlu0 %1350
    %v1352 = vsel %vm157, %v1348, 0.0
    %1353 = vadd.xlane.f32.xlu0 %v1352
    %v1354 = vpop.xlane.xlu0 %1353
    %v1355 = vmul.f32 %v1351, %v170
    %v1356 = vmul.f32 %v1354, %v170
    %v1357 = vadd.f32 %v1355, 1e-12
    %v1358 = vadd.f32 %v1356, 1e-12
    %v1359 = vrsqrt.pop %v1357
    %v1360 = vmul.f32 %v1359, %v1357
    %v1361 = vmul.f32 %v1360, %v1359
    %v1362 = vmul.f32 0.5, %v1361
    %v1363 = vsub.f32 1.5, %v1362
    %v1364 = vmul.f32 %v1359, %v1363
    %vm1365 = vweird.f32 %v1357
    %vm1366 = vweird.f32 %v1359
    %vm1367 = vmor %vm1365, %vm1366
    %v1368 = vsel %vm1367, %v1359, %v1364
    %v1369 = vrsqrt.pop %v1358
    %v1370 = vmul.f32 %v1369, %v1358
    %v1371 = vmul.f32 %v1370, %v1369
    %v1372 = vmul.f32 0.5, %v1371
    %v1373 = vsub.f32 1.5, %v1372
    %v1374 = vmul.f32 %v1369, %v1373
    %vm1375 = vweird.f32 %v1358
    %vm1376 = vweird.f32 %v1369
    %vm1377 = vmor %vm1375, %vm1376
    %v1378 = vsel %vm1377, %v1369, %v1374
    %v1379 = vmul.f32 %v1345, %v1368
    %v1380 = vmul.f32 %v1346, %v1378
    %v1382 = vperm.slane %v1334, 0
    %v1384 = vmul.f32 %v1379, %v1382
    %v1385 = vmul.f32 %v1380, %v1382
    %v1387 = vperm.slane %v1336, 0
    %v1389 = vadd.f32 %v1384, %v1387
    %v1390 = vadd.f32 %v1385, %v1387
    %1391 = vst.msk [vmem:[#allocation2] sm:$0xff] %vm157, %v1389
    %1392 = vst.msk [vmem:[#allocation2 + $0x8] sm:$0xff] %vm157, %v1390
    // Predicated region
    $region70: #{bert_embedding_layer_forward.1} parent=1 // pred_check
      _
    $region71: #{bert_embedding_layer_forward.1} parent=1 // pred_check_branch
      %1394 = sbr.rel (0) target = $region73
    $region72: #{bert_embedding_layer_forward.1} parent=1 // pred_region
      %1396 = vsyncadd [#allocation3], 0
      %s1397 = sshll.u32 [#allocation2], 4
      %s1398 = int_to_ptr.vmem [resolvable:$true] %s1397
      %s1399 = sshll.u32 %s17, 4
      %s1400 = int_to_ptr.hbm [resolvable:$true] %s1399
      %1405 = dma.vmem_to_hbm [thread:$0]  %s1398, 256, %s1400, [#allocation3], 128, 128, 8
    $region73: #{bert_embedding_layer_forward.1} parent=1 // pred_fallthru
      _
    // Predicated region
    $region74: #{bert_embedding_layer_forward.1} parent=1 // pred_check
      _
    $region75: #{bert_embedding_layer_forward.1} parent=1 // pred_check_branch
      %1407 = sbr.rel (0) target = $region77
    $region76: #{bert_embedding_layer_forward.1} parent=1 // pred_region
      %1409 = dma.done [#allocation3], 256
    $region77: #{bert_embedding_layer_forward.1} parent=1 // pred_fallthru
      _
    %1410 = vsyncpa [#allocation3], 1

</llo_original>
